<compile_context>
chip_gen: v5e
topology: v5e:2x2
jax: 0.10.0
libtpu: 0.0.40
codegen_flags: <defaults>
</compile_context>

<pallas_src>
import functools

import jax
import jax.numpy as jnp
import numpy as np
from jax.experimental import pallas as pl
from jax.experimental.pallas import tpu as pltpu

EPS = 1e-5
LANE = 128
# Scoped-VMEM ceiling: well above the 16/32 MiB defaults but safely below the
# v7x 64 MiB physical VMEM per TensorCore (tile sizes below use far less).
VMEM_LIMIT = 48 * 1024 * 1024


def _round_up(x, m):
    return ((x + m - 1) // m) * m


def same_padding(kernel_size, stride):
    return max(kernel_size - stride, 0) // 2


# ---------------------------------------------------------------------------
# Kernel 1: conv-as-matmul (im2col) + per-M-tile partial BN statistics.
# grid = (n_m, n_k).  The f32 output block is the K accumulator; partial
# per-channel sum / sum-of-squares are emitted once per M tile at the last K
# step.  Padded M rows come from all-zero patch rows, so their y rows are
# exactly zero and contribute nothing to the stats (no masking needed).
# ---------------------------------------------------------------------------
def _conv_stats_kernel(p_ref, w_ref, y_ref, sum_ref, sumsq_ref):
    k = pl.program_id(1)
    nk = pl.num_programs(1)

    @pl.when(k == 0)
    def _init():
        y_ref[...] = jnp.zeros_like(y_ref)

    y_ref[...] += jnp.dot(p_ref[...], w_ref[...],
                          preferred_element_type=jnp.float32)

    @pl.when(k == nk - 1)
    def _emit_stats():
        y = y_ref[...]
        psum = jnp.sum(y, axis=0, keepdims=True)
        psumsq = jnp.sum(y * y, axis=0, keepdims=True)
        # Broadcast the (1, CoutP) partials across the 8-row block so the
        # stats outputs stay (8, 128)-tile aligned; wrapper reads row 0.
        sum_ref[...] = jnp.broadcast_to(psum, sum_ref.shape)
        sumsq_ref[...] = jnp.broadcast_to(psumsq, sumsq_ref.shape)


# ---------------------------------------------------------------------------
# Kernel 2: fused BatchNorm affine (scale*y + shift) + ReLU, elementwise over
# lane-dense (TM, CoutP) tiles, written in place over the y buffer.
# ---------------------------------------------------------------------------
def _bn_relu_kernel(y_ref, scale_ref, shift_ref, o_ref):
    out = y_ref[...] * scale_ref[...] + shift_ref[...]
    o_ref[...] = jnp.maximum(out, 0.0).astype(o_ref.dtype)


def conv_bn_relu(x_nchw, weight_oihw, gamma, beta, stride=1, padding="same",
                 compute_dtype=jnp.bfloat16, tm=1024, tk=512):
    """x_nchw: [N, Cin, H, W]; weight_oihw: [Cout, Cin, KH, KW]."""
    N, Cin, H, W = x_nchw.shape
    Cout, _, KH, KW = weight_oihw.shape

    if padding == "same":
        ph = same_padding(KH, stride)
        pw = same_padding(KW, stride)
    else:
        ph = pw = int(padding)

    # --- wrapper glue: NCHW -> NHWC, zero pad, im2col patch extraction -------
    # TODO(synk): for production conv sizes, replace the materialized im2col
    # with in-kernel per-(dh,dw)-tap DMA + accumulation (cuts input HBM reads
    # ~KH*KW x and removes the full-size XLA intermediates).
    x = jnp.transpose(x_nchw, (0, 2, 3, 1))              # [N, H, W, Cin]
    xp = jnp.pad(x, ((0, 0), (ph, ph), (pw, pw), (0, 0)))

    Hout = (H + 2 * ph - KH) // stride + 1
    Wout = (W + 2 * pw - KW) // stride + 1

    patches = []
    for dh in range(KH):
        for dw in range(KW):
            patches.append(
                xp[:, dh:dh + stride * Hout:stride,
                   dw:dw + stride * Wout:stride, :])
    patches = jnp.concatenate(patches, axis=-1)          # [N, Hout, Wout, K]

    M = N * Hout * Wout
    K = KH * KW * Cin

    # Lane-dense / tile-aligned padded sizes.  bf16 packs 16 rows per vreg.
    sub = 16 if np.dtype(compute_dtype).itemsize < 4 else 8
    CoutP = _round_up(Cout, LANE)
    KP0 = _round_up(K, LANE)
    TK = KP0 if KP0 <= tk else _round_up(tk, LANE)
    KP = _round_up(K, TK)
    TM = _round_up(min(tm, M), sub)
    MP = _round_up(M, TM)
    n_m = MP // TM
    n_k = KP // TK

    patches = patches.reshape(M, K).astype(compute_dtype)
    patches = jnp.pad(patches, ((0, MP - M), (0, KP - K)))           # [MP, KP]

    # weight [Cout,Cin,KH,KW] -> [KH,KW,Cin,Cout] -> [K,Cout] (patch order).
    w_mat = jnp.transpose(weight_oihw, (2, 3, 1, 0)).reshape(K, Cout)
    w_mat = jnp.pad(w_mat.astype(compute_dtype),
                    ((0, KP - K), (0, CoutP - Cout)))                # [KP, CoutP]

    # ---- pass 1: conv matmul + per-tile partial stats (single pass over y) --
    y_flat, psum, psumsq = pl.pallas_call(
        _conv_stats_kernel,
        out_shape=(
            jax.ShapeDtypeStruct((MP, CoutP), jnp.float32),
            jax.ShapeDtypeStruct((n_m * 8, CoutP), jnp.float32),
            jax.ShapeDtypeStruct((n_m * 8, CoutP), jnp.float32),
        ),
        grid_spec=pltpu.PrefetchScalarGridSpec(
            num_scalar_prefetch=0,
            grid=(n_m, n_k),                      # (M tiles, K reduction)
            in_specs=[
                pl.BlockSpec((TM, TK), lambda m, k: (m, k)),
                pl.BlockSpec((TK, CoutP), lambda m, k: (k, 0)),
            ],
            out_specs=[
                pl.BlockSpec((TM, CoutP), lambda m, k: (m, 0)),
                pl.BlockSpec((8, CoutP), lambda m, k: (m, 0)),
                pl.BlockSpec((8, CoutP), lambda m, k: (m, 0)),
            ],
        ),
        compiler_params=pltpu.CompilerParams(
            dimension_semantics=("parallel", "arbitrary"),
            vmem_limit_bytes=VMEM_LIMIT,
        ),
    )(patches, w_mat)

    # ---- tiny O(Cout) fold of the stats into the BN affine (wrapper glue) ---
    total_sum = psum.reshape(n_m, 8, CoutP)[:, 0, :].sum(axis=0)
    total_sumsq = psumsq.reshape(n_m, 8, CoutP)[:, 0, :].sum(axis=0)
    inv_count = 1.0 / M
    mean = total_sum * inv_count
    var = jnp.maximum(total_sumsq * inv_count - mean * mean, 0.0)
    gamma_p = jnp.pad(gamma.astype(jnp.float32), (0, CoutP - Cout))
    beta_p = jnp.pad(beta.astype(jnp.float32), (0, CoutP - Cout))
    scale_v = gamma_p * jax.lax.rsqrt(var + EPS)
    shift_v = beta_p - mean * scale_v
    scale = scale_v.reshape(1, CoutP)
    shift = shift_v.reshape(1, CoutP)

    # ---- pass 2: fused BN affine + ReLU, in place over the y buffer ---------
    out_flat = pl.pallas_call(
        _bn_relu_kernel,
        out_shape=jax.ShapeDtypeStruct((MP, CoutP), jnp.float32),
        grid_spec=pltpu.PrefetchScalarGridSpec(
            num_scalar_prefetch=0,
            grid=(n_m,),
            in_specs=[
                pl.BlockSpec((TM, CoutP), lambda m: (m, 0)),
                pl.BlockSpec((1, CoutP), lambda m: (0, 0)),
                pl.BlockSpec((1, CoutP), lambda m: (0, 0)),
            ],
            out_specs=pl.BlockSpec((TM, CoutP), lambda m: (m, 0)),
        ),
        input_output_aliases={0: 0},
        compiler_params=pltpu.CompilerParams(
            dimension_semantics=("parallel",),
            vmem_limit_bytes=VMEM_LIMIT,
        ),
    )(y_flat, scale, shift)

    out = out_flat[:M, :Cout].reshape(N, Hout, Wout, Cout)
    return jnp.transpose(out, (0, 3, 1, 2))              # NCHW


def reference(x_nchw, weight_oihw, gamma, beta, stride=1):
    KH, KW = weight_oihw.shape[2], weight_oihw.shape[3]
    ph = same_padding(KH, stride)
    pw = same_padding(KW, stride)
    y = jax.lax.conv_general_dilated(
        x_nchw, weight_oihw,
        window_strides=(stride, stride),
        padding=((ph, ph), (pw, pw)),
        dimension_numbers=("NCHW", "OIHW", "NCHW"),
    )
    mean = y.mean(axis=(0, 2, 3), keepdims=True)
    var = ((y - mean) ** 2).mean(axis=(0, 2, 3), keepdims=True)
    y_hat = (y - mean) / jnp.sqrt(var + EPS)
    out = y_hat * gamma.reshape(1, -1, 1, 1) + beta.reshape(1, -1, 1, 1)
    return jnp.maximum(out, 0.0)


if __name__ == "__main__":
    # Module config: ConvBnRelu(in_channels=4, out_channels=8, kernel_size=3)
    N, Cin, H, W = 2, 4, 16, 16
    Cout, KH, KW = 8, 3, 3

    key = jax.random.PRNGKey(0)
    kx, kw, kg, kb = jax.random.split(key, 4)
    x = jax.random.normal(kx, (N, Cin, H, W), dtype=jnp.float32)

    fan_in = Cin * KH * KW
    bound = 1.0 / np.sqrt(fan_in)
    weight = jax.random.uniform(kw, (Cout, Cin, KH, KW), jnp.float32, -bound, bound)
    # Non-trivial affine params to exercise the folded scale/shift path.
    gamma = jax.random.uniform(kg, (Cout,), jnp.float32, 0.5, 1.5)
    beta = 0.1 * jax.random.normal(kb, (Cout,), jnp.float32)

    ref = reference(x, weight, gamma, beta)

    # Tight numerical check with f32 matmul inputs.
    fn_f32 = jax.jit(functools.partial(conv_bn_relu, compute_dtype=jnp.float32))
    out_f32 = jax.block_until_ready(fn_f32(x, weight, gamma, beta))
    np.testing.assert_allclose(np.asarray(out_f32), np.asarray(ref),
                               rtol=1e-3, atol=1e-3)

    # Default fast path: bf16 MXU inputs, f32 accumulation/stats (looser check).
    fn_bf16 = jax.jit(conv_bn_relu)
    out_bf16 = jax.block_until_ready(fn_bf16(x, weight, gamma, beta))
    np.testing.assert_allclose(np.asarray(out_bf16), np.asarray(ref),
                               rtol=5e-2, atol=5e-2)

    print("KERNEL_OK")
</pallas_src>

<mosaic_0001>
module attributes {stable_mosaic.version = 11 : i64} {
  func.func @_conv_stats_kernel(%arg0: i32, %arg1: i32, %arg2: memref<512x128xf32, #tpu.memory_space<vmem>>, %arg3: memref<128x128xf32, #tpu.memory_space<vmem>>, %arg4: memref<512x128xf32, #tpu.memory_space<vmem>>, %arg5: memref<8x128xf32, #tpu.memory_space<vmem>>, %arg6: memref<8x128xf32, #tpu.memory_space<vmem>>) attributes {dimension_semantics = [#tpu.dimension_semantics<parallel>, #tpu.dimension_semantics<arbitrary>], iteration_bounds = array<i64: 1, 1>, scalar_prefetch = 0 : i64, scratch_operands = 0 : i64, tpu.core_type = #tpu.core_type<tc>, window_params = [{transform_indices = @transform_0, window_bounds = array<i64: 512, 128>}, {transform_indices = @transform_1, window_bounds = array<i64: 128, 128>}, {transform_indices = @transform_2, window_bounds = array<i64: 512, 128>}, {transform_indices = @transform_3, window_bounds = array<i64: 8, 128>}, {transform_indices = @transform_4, window_bounds = array<i64: 8, 128>}]} {
    %c0_i32 = arith.constant 0 : i32
    %0 = arith.cmpi eq, %arg1, %c0_i32 : i32
    %1 = arith.extui %0 : i1 to i32
    %c0_i32_0 = arith.constant 0 : i32
    %2 = arith.cmpi ne, %1, %c0_i32_0 : i32
    scf.if %2 {
      %cst_10 = arith.constant 0.000000e+00 : f32
      %12 = vector.broadcast %cst_10 : f32 to vector<512x128xf32>
      %c0_11 = arith.constant 0 : index
      %c0_12 = arith.constant 0 : index
      %13 = vector.load %arg4[%c0_11, %c0_12] : memref<512x128xf32, #tpu.memory_space<vmem>>, vector<512x128xf32>
      tpu.vector_store %arg4[%c0_11, %c0_12], %12 {strides = array<i32>} : memref<512x128xf32, #tpu.memory_space<vmem>>, vector<512x128xf32>,
    } else {
    }
    %c0 = arith.constant 0 : index
    %c0_1 = arith.constant 0 : index
    %3 = vector.load %arg4[%c0, %c0_1] : memref<512x128xf32, #tpu.memory_space<vmem>>, vector<512x128xf32>
    %c0_2 = arith.constant 0 : index
    %c0_3 = arith.constant 0 : index
    %4 = vector.load %arg2[%c0_2, %c0_3] : memref<512x128xf32, #tpu.memory_space<vmem>>, vector<512x128xf32>
    %c0_4 = arith.constant 0 : index
    %c0_5 = arith.constant 0 : index
    %5 = vector.load %arg3[%c0_4, %c0_5] : memref<128x128xf32, #tpu.memory_space<vmem>>, vector<128x128xf32>
    %cst = arith.constant dense<0.000000e+00> : vector<512x128xf32>
    %6 = tpu.matmul %4, %5, %cst {dimension_numbers = #tpu.dot_dimension_numbers<[1], [0], [0], [1], [0, 0, 1, 1], [], []>} : vector<512x128xf32>, vector<128x128xf32>, vector<512x128xf32> -> vector<512x128xf32>
    %7 = arith.addf %3, %6 : vector<512x128xf32>
    %c0_6 = arith.constant 0 : index
    %c0_7 = arith.constant 0 : index
    %8 = vector.load %arg4[%c0_6, %c0_7] : memref<512x128xf32, #tpu.memory_space<vmem>>, vector<512x128xf32>
    tpu.vector_store %arg4[%c0_6, %c0_7], %7 {strides = array<i32>} : memref<512x128xf32, #tpu.memory_space<vmem>>, vector<512x128xf32>,
    %c0_i32_8 = arith.constant 0 : i32
    %9 = arith.cmpi eq, %arg1, %c0_i32_8 : i32
    %10 = arith.extui %9 : i1 to i32
    %c0_i32_9 = arith.constant 0 : i32
    %11 = arith.cmpi ne, %10, %c0_i32_9 : i32
    scf.if %11 {
      %c0_10 = arith.constant 0 : index
      %c0_11 = arith.constant 0 : index
      %12 = vector.load %arg4[%c0_10, %c0_11] : memref<512x128xf32, #tpu.memory_space<vmem>>, vector<512x128xf32>
      %cst_12 = arith.constant dense<0.000000e+00> : vector<128xf32>
      %13 = vector.multi_reduction <add>, %12, %cst_12 [0] : vector<512x128xf32> to vector<128xf32>
      %14 = vector.shape_cast %13 : vector<128xf32> to vector<1x128xf32>
      %15 = arith.mulf %12, %12 : vector<512x128xf32>
      %cst_13 = arith.constant dense<0.000000e+00> : vector<128xf32>
      %16 = vector.multi_reduction <add>, %15, %cst_13 [0] : vector<512x128xf32> to vector<128xf32>
      %17 = vector.shape_cast %16 : vector<128xf32> to vector<1x128xf32>
      %18 = vector.shape_cast %14 : vector<1x128xf32> to vector<1x128xf32>
      %19 = vector.broadcast %18 : vector<1x128xf32> to vector<8x128xf32>
      %c0_14 = arith.constant 0 : index
      %c0_15 = arith.constant 0 : index
      %20 = vector.load %arg5[%c0_14, %c0_15] : memref<8x128xf32, #tpu.memory_space<vmem>>, vector<8x128xf32>
      tpu.vector_store %arg5[%c0_14, %c0_15], %19 {strides = array<i32>} : memref<8x128xf32, #tpu.memory_space<vmem>>, vector<8x128xf32>,
      %21 = vector.shape_cast %17 : vector<1x128xf32> to vector<1x128xf32>
      %22 = vector.broadcast %21 : vector<1x128xf32> to vector<8x128xf32>
      %c0_16 = arith.constant 0 : index
      %c0_17 = arith.constant 0 : index
      %23 = vector.load %arg6[%c0_16, %c0_17] : memref<8x128xf32, #tpu.memory_space<vmem>>, vector<8x128xf32>
      tpu.vector_store %arg6[%c0_16, %c0_17], %22 {strides = array<i32>} : memref<8x128xf32, #tpu.memory_space<vmem>>, vector<8x128xf32>,
    } else {
    }
    return
  }
  func.func @transform_0(%arg0: i32, %arg1: i32) -> (i32, i32) {
    %c0_i32 = arith.constant 0 : i32
    return %arg0, %arg1 : i32, i32
  }
  func.func @transform_1(%arg0: i32, %arg1: i32) -> (i32, i32) {
    %c0_i32 = arith.constant 0 : i32
    %c0_i32_0 = arith.constant 0 : i32
    return %arg1, %c0_i32 : i32, i32
  }
  func.func @transform_2(%arg0: i32, %arg1: i32) -> (i32, i32) {
    %c0_i32 = arith.constant 0 : i32
    %c0_i32_0 = arith.constant 0 : i32
    return %arg0, %c0_i32 : i32, i32
  }
  func.func @transform_3(%arg0: i32, %arg1: i32) -> (i32, i32) {
    %c0_i32 = arith.constant 0 : i32
    %c0_i32_0 = arith.constant 0 : i32
    return %arg0, %c0_i32 : i32, i32
  }
  func.func @transform_4(%arg0: i32, %arg1: i32) -> (i32, i32) {
    %c0_i32 = arith.constant 0 : i32
    %c0_i32_0 = arith.constant 0 : i32
    return %arg0, %c0_i32 : i32, i32
  }
}

module attributes {stable_mosaic.version = 11 : i64} {
  func.func @_bn_relu_kernel(%arg0: i32, %arg1: memref<512x128xf32, #tpu.memory_space<vmem>>, %arg2: memref<1x128xf32, #tpu.memory_space<vmem>>, %arg3: memref<1x128xf32, #tpu.memory_space<vmem>>, %arg4: memref<512x128xf32, #tpu.memory_space<vmem>>) attributes {dimension_semantics = [#tpu.dimension_semantics<parallel>], iteration_bounds = array<i64: 1>, scalar_prefetch = 0 : i64, scratch_operands = 0 : i64, tpu.core_type = #tpu.core_type<tc>, window_params = [{transform_indices = @transform_0, window_bounds = array<i64: 512, 128>}, {pipeline_mode = #tpu.pipeline_mode<synchronous>, transform_indices = @transform_1, window_bounds = array<i64: 1, 128>}, {pipeline_mode = #tpu.pipeline_mode<synchronous>, transform_indices = @transform_2, window_bounds = array<i64: 1, 128>}, {transform_indices = @transform_3, window_bounds = array<i64: 512, 128>}]} {
    %c0 = arith.constant 0 : index
    %c0_0 = arith.constant 0 : index
    %0 = vector.load %arg1[%c0, %c0_0] : memref<512x128xf32, #tpu.memory_space<vmem>>, vector<512x128xf32>
    %c0_1 = arith.constant 0 : index
    %c0_2 = arith.constant 0 : index
    %1 = vector.load %arg2[%c0_1, %c0_2] : memref<1x128xf32, #tpu.memory_space<vmem>>, vector<1x128xf32>
    %2 = vector.broadcast %1 : vector<1x128xf32> to vector<512x128xf32>
    %3 = arith.mulf %0, %2 : vector<512x128xf32>
    %c0_3 = arith.constant 0 : index
    %c0_4 = arith.constant 0 : index
    %4 = vector.load %arg3[%c0_3, %c0_4] : memref<1x128xf32, #tpu.memory_space<vmem>>, vector<1x128xf32>
    %5 = vector.broadcast %4 : vector<1x128xf32> to vector<512x128xf32>
    %6 = arith.addf %3, %5 : vector<512x128xf32>
    %cst = arith.constant 0.000000e+00 : f32
    %7 = vector.broadcast %cst : f32 to vector<512x128xf32>
    %8 = arith.maximumf %6, %7 : vector<512x128xf32>
    %c0_5 = arith.constant 0 : index
    %c0_6 = arith.constant 0 : index
    %9 = vector.load %arg4[%c0_5, %c0_6] : memref<512x128xf32, #tpu.memory_space<vmem>>, vector<512x128xf32>
    tpu.vector_store %arg4[%c0_5, %c0_6], %8 {strides = array<i32>} : memref<512x128xf32, #tpu.memory_space<vmem>>, vector<512x128xf32>,
    return
  }
  func.func @transform_0(%arg0: i32) -> (i32, i32) {
    %c0_i32 = arith.constant 0 : i32
    %c0_i32_0 = arith.constant 0 : i32
    return %arg0, %c0_i32 : i32, i32
  }
  func.func @transform_1(%arg0: i32) -> (i32, i32) {
    %c0_i32 = arith.constant 0 : i32
    %c0_i32_0 = arith.constant 0 : i32
    %c0_i32_1 = arith.constant 0 : i32
    return %c0_i32, %c0_i32_0 : i32, i32
  }
  func.func @transform_2(%arg0: i32) -> (i32, i32) {
    %c0_i32 = arith.constant 0 : i32
    %c0_i32_0 = arith.constant 0 : i32
    %c0_i32_1 = arith.constant 0 : i32
    return %c0_i32, %c0_i32_0 : i32, i32
  }
  func.func @transform_3(%arg0: i32) -> (i32, i32) {
    %c0_i32 = arith.constant 0 : i32
    %c0_i32_0 = arith.constant 0 : i32
    return %arg0, %c0_i32 : i32, i32
  }
}

</mosaic_0001>

<llo_original>
// kernel: conv_bn_relu.3
$region0: #{conv_bn_relu.3}
  #allocation0 [shape = 'u32[]', space=smem, size = 0x4, offset = 0x4, fixed_abs, tag = 'smem constant byte address 0x4 - core index']
  #allocation1 [shape = 'u32[72,128]{1,0:T(1,128)}', space=vmem, size = 0x9000, scoped, tag = 'internal scratch']
  %s0 = inlined_call_operand.vmem [shape: f32[512,128], index: 0, kind: input, shape index: {}, may-alias: {0,3}]
  %s1 = inlined_call_operand.vmem [shape: f32[1,128], index: 1, kind: input, shape index: {}]
  %s2 = inlined_call_operand.vmem [shape: f32[1,128], index: 2, kind: input, shape index: {}]
  %s3 = inlined_call_operand.vmem [shape: f32[512,128], index: 3, kind: output, shape index: {}, may-alias: {0,3}]
  %s4 = sld [smem:[#allocation0]]
  $region22: #{conv_bn_relu.3} parent=0
    _
  %s6 = ssub.s32 1, %s4
  %s7 = scalar_select 0, %s6, %s4
  // Predicated region
  $region2: #{conv_bn_relu.3} parent=0 // pred_check
    _
  $region3: #{conv_bn_relu.3} parent=0 // pred_check_branch
    %9 = sbr.rel (0) target = $region5
  $region4: #{conv_bn_relu.3} parent=0 // pred_region
    _
  $region5: #{conv_bn_relu.3} parent=0 // pred_fallthru
    _
  // Predicated region
  $region6: #{conv_bn_relu.3} parent=0 // pred_check
    _
  $region7: #{conv_bn_relu.3} parent=0 // pred_check_branch
    %11 = sbr.rel (0) target = $region9
  $region8: #{conv_bn_relu.3} parent=0 // pred_region
    _
  $region9: #{conv_bn_relu.3} parent=0 // pred_fallthru
    _
  // Predicated region
  $region10: #{conv_bn_relu.3} parent=0 // pred_check
    _
  $region11: #{conv_bn_relu.3} parent=0 // pred_check_branch
    %13 = sbr.rel (0) target = $region13
  $region12: #{conv_bn_relu.3} parent=0 // pred_region
    _
  $region13: #{conv_bn_relu.3} parent=0 // pred_fallthru
    _
  %v14 = vld [vmem:[%s0] sm:$0xff]
  %v15 = vld [vmem:[%s0 + $0x8] sm:$0xff]
  %v16 = vld [vmem:[%s0 + $0x10] sm:$0xff]
  %v17 = vld [vmem:[%s0 + $0x18] sm:$0xff]
  %v18 = vld [vmem:[%s0 + $0x20] sm:$0xff]
  %v19 = vld [vmem:[%s0 + $0x28] sm:$0xff]
  %v20 = vld [vmem:[%s0 + $0x30] sm:$0xff]
  %v21 = vld [vmem:[%s0 + $0x38] sm:$0xff]
  %v22 = vld [vmem:[%s0 + $0x40] sm:$0xff]
  %v23 = vld [vmem:[%s0 + $0x48] sm:$0xff]
  %v24 = vld [vmem:[%s0 + $0x50] sm:$0xff]
  %v25 = vld [vmem:[%s0 + $0x58] sm:$0xff]
  %v26 = vld [vmem:[%s0 + $0x60] sm:$0xff]
  %v27 = vld [vmem:[%s0 + $0x68] sm:$0xff]
  %v28 = vld [vmem:[%s0 + $0x70] sm:$0xff]
  %v29 = vld [vmem:[%s0 + $0x78] sm:$0xff]
  %v30 = vld [vmem:[%s0 + $0x80] sm:$0xff]
  %v31 = vld [vmem:[%s0 + $0x88] sm:$0xff]
  %v32 = vld [vmem:[%s0 + $0x90] sm:$0xff]
  %v33 = vld [vmem:[%s0 + $0x98] sm:$0xff]
  %v34 = vld [vmem:[%s0 + $0xa0] sm:$0xff]
  %v35 = vld [vmem:[%s0 + $0xa8] sm:$0xff]
  %v36 = vld [vmem:[%s0 + $0xb0] sm:$0xff]
  %v37 = vld [vmem:[%s0 + $0xb8] sm:$0xff]
  %v38 = vld [vmem:[%s0 + $0xc0] sm:$0xff]
  %v39 = vld [vmem:[%s0 + $0xc8] sm:$0xff]
  %v40 = vld [vmem:[%s0 + $0xd0] sm:$0xff]
  %v41 = vld [vmem:[%s0 + $0xd8] sm:$0xff]
  %v42 = vld [vmem:[%s0 + $0xe0] sm:$0xff]
  %v43 = vld [vmem:[%s0 + $0xe8] sm:$0xff]
  %v44 = vld [vmem:[%s0 + $0xf0] sm:$0xff]
  %v45 = vld [vmem:[%s0 + $0xf8] sm:$0xff]
  %v46 = vld [vmem:[%s0 + $0x100] sm:$0xff]
  %v47 = vld [vmem:[%s0 + $0x108] sm:$0xff]
  %v48 = vld [vmem:[%s0 + $0x110] sm:$0xff]
  %v49 = vld [vmem:[%s0 + $0x118] sm:$0xff]
  %v50 = vld [vmem:[%s0 + $0x120] sm:$0xff]
  %v51 = vld [vmem:[%s0 + $0x128] sm:$0xff]
  %v52 = vld [vmem:[%s0 + $0x130] sm:$0xff]
  %v53 = vld [vmem:[%s0 + $0x138] sm:$0xff]
  %v54 = vld [vmem:[%s0 + $0x140] sm:$0xff]
  %v55 = vld [vmem:[%s0 + $0x148] sm:$0xff]
  %v56 = vld [vmem:[%s0 + $0x150] sm:$0xff]
  %v57 = vld [vmem:[%s0 + $0x158] sm:$0xff]
  %v58 = vld [vmem:[%s0 + $0x160] sm:$0xff]
  %v59 = vld [vmem:[%s0 + $0x168] sm:$0xff]
  %v60 = vld [vmem:[%s0 + $0x170] sm:$0xff]
  %v61 = vld [vmem:[%s0 + $0x178] sm:$0xff]
  %v62 = vld [vmem:[%s0 + $0x180] sm:$0xff]
  %v63 = vld [vmem:[%s0 + $0x188] sm:$0xff]
  %v64 = vld [vmem:[%s0 + $0x190] sm:$0xff]
  %v65 = vld [vmem:[%s0 + $0x198] sm:$0xff]
  %v66 = vld [vmem:[%s0 + $0x1a0] sm:$0xff]
  %v67 = vld [vmem:[%s0 + $0x1a8] sm:$0xff]
  %v68 = vld [vmem:[%s0 + $0x1b0] sm:$0xff]
  %v69 = vld [vmem:[%s0 + $0x1b8] sm:$0xff]
  %v70 = vld [vmem:[%s0 + $0x1c0] sm:$0xff]
  %v71 = vld [vmem:[%s0 + $0x1c8] sm:$0xff]
  %v72 = vld [vmem:[%s0 + $0x1d0] sm:$0xff]
  %v73 = vld [vmem:[%s0 + $0x1d8] sm:$0xff]
  %v74 = vld [vmem:[%s0 + $0x1e0] sm:$0xff]
  %v75 = vld [vmem:[%s0 + $0x1e8] sm:$0xff]
  %v76 = vld [vmem:[%s0 + $0x1f0] sm:$0xff]
  %v77 = vld [vmem:[%s0 + $0x1f8] sm:$0xff]
  %v78 = vld [vmem:[%s1] sm:$0x1]
  %v80 = vperm.slane %v78, 0
  %v82 = vmul.f32 %v14, %v80
  %v83 = vmul.f32 %v15, %v80
  %v84 = vmul.f32 %v16, %v80
  %v85 = vmul.f32 %v17, %v80
  %v86 = vmul.f32 %v18, %v80
  %v87 = vmul.f32 %v19, %v80
  %v88 = vmul.f32 %v20, %v80
  %v89 = vmul.f32 %v21, %v80
  %v90 = vmul.f32 %v22, %v80
  %v91 = vmul.f32 %v23, %v80
  %v92 = vmul.f32 %v24, %v80
  %v93 = vmul.f32 %v25, %v80
  %v94 = vmul.f32 %v26, %v80
  %v95 = vmul.f32 %v27, %v80
  %v96 = vmul.f32 %v28, %v80
  %v97 = vmul.f32 %v29, %v80
  %v98 = vmul.f32 %v30, %v80
  %v99 = vmul.f32 %v31, %v80
  %v100 = vmul.f32 %v32, %v80
  %v101 = vmul.f32 %v33, %v80
  %v102 = vmul.f32 %v34, %v80
  %v103 = vmul.f32 %v35, %v80
  %v104 = vmul.f32 %v36, %v80
  %v105 = vmul.f32 %v37, %v80
  %v106 = vmul.f32 %v38, %v80
  %v107 = vmul.f32 %v39, %v80
  %v108 = vmul.f32 %v40, %v80
  %v109 = vmul.f32 %v41, %v80
  %v110 = vmul.f32 %v42, %v80
  %v111 = vmul.f32 %v43, %v80
  %v112 = vmul.f32 %v44, %v80
  %v113 = vmul.f32 %v45, %v80
  %v114 = vmul.f32 %v46, %v80
  %v115 = vmul.f32 %v47, %v80
  %v116 = vmul.f32 %v48, %v80
  %v117 = vmul.f32 %v49, %v80
  %v118 = vmul.f32 %v50, %v80
  %v119 = vmul.f32 %v51, %v80
  %v120 = vmul.f32 %v52, %v80
  %v121 = vmul.f32 %v53, %v80
  %v122 = vmul.f32 %v54, %v80
  %v123 = vmul.f32 %v55, %v80
  %v124 = vmul.f32 %v56, %v80
  %v125 = vmul.f32 %v57, %v80
  %v126 = vmul.f32 %v58, %v80
  %v127 = vmul.f32 %v59, %v80
  %v128 = vmul.f32 %v60, %v80
  %v129 = vmul.f32 %v61, %v80
  %v130 = vmul.f32 %v62, %v80
  %v131 = vmul.f32 %v63, %v80
  %v132 = vmul.f32 %v64, %v80
  %v133 = vmul.f32 %v65, %v80
  %v134 = vmul.f32 %v66, %v80
  %v135 = vmul.f32 %v67, %v80
  %v136 = vmul.f32 %v68, %v80
  %v137 = vmul.f32 %v69, %v80
  %v138 = vmul.f32 %v70, %v80
  %v139 = vmul.f32 %v71, %v80
  %v140 = vmul.f32 %v72, %v80
  %v141 = vmul.f32 %v73, %v80
  %v142 = vmul.f32 %v74, %v80
  %v143 = vmul.f32 %v75, %v80
  %v144 = vmul.f32 %v76, %v80
  %v145 = vmul.f32 %v77, %v80
  %v146 = vld [vmem:[%s2] sm:$0x1]
  %v148 = vperm.slane %v146, 0
  %v150 = vadd.f32 %v82, %v148
  %v151 = vadd.f32 %v83, %v148
  %v152 = vadd.f32 %v84, %v148
  %v153 = vadd.f32 %v85, %v148
  %v154 = vadd.f32 %v86, %v148
  %v155 = vadd.f32 %v87, %v148
  %v156 = vadd.f32 %v88, %v148
  %v157 = vadd.f32 %v89, %v148
  %v158 = vadd.f32 %v90, %v148
  %v159 = vadd.f32 %v91, %v148
  %v160 = vadd.f32 %v92, %v148
  %v161 = vadd.f32 %v93, %v148
  %v162 = vadd.f32 %v94, %v148
  %v163 = vadd.f32 %v95, %v148
  %v164 = vadd.f32 %v96, %v148
  %v165 = vadd.f32 %v97, %v148
  %v166 = vadd.f32 %v98, %v148
  %v167 = vadd.f32 %v99, %v148
  %v168 = vadd.f32 %v100, %v148
  %v169 = vadd.f32 %v101, %v148
  %v170 = vadd.f32 %v102, %v148
  %v171 = vadd.f32 %v103, %v148
  %v172 = vadd.f32 %v104, %v148
  %v173 = vadd.f32 %v105, %v148
  %v174 = vadd.f32 %v106, %v148
  %v175 = vadd.f32 %v107, %v148
  %v176 = vadd.f32 %v108, %v148
  %v177 = vadd.f32 %v109, %v148
  %v178 = vadd.f32 %v110, %v148
  %v179 = vadd.f32 %v111, %v148
  %v180 = vadd.f32 %v112, %v148
  %v181 = vadd.f32 %v113, %v148
  %v182 = vadd.f32 %v114, %v148
  %v183 = vadd.f32 %v115, %v148
  %v184 = vadd.f32 %v116, %v148
  %v185 = vadd.f32 %v117, %v148
  %v186 = vadd.f32 %v118, %v148
  %v187 = vadd.f32 %v119, %v148
  %v188 = vadd.f32 %v120, %v148
  %v189 = vadd.f32 %v121, %v148
  %v190 = vadd.f32 %v122, %v148
  %v191 = vadd.f32 %v123, %v148
  %v192 = vadd.f32 %v124, %v148
  %v193 = vadd.f32 %v125, %v148
  %v194 = vadd.f32 %v126, %v148
  %v195 = vadd.f32 %v127, %v148
  %v196 = vadd.f32 %v128, %v148
  %v197 = vadd.f32 %v129, %v148
  %v198 = vadd.f32 %v130, %v148
  %v199 = vadd.f32 %v131, %v148
  %v200 = vadd.f32 %v132, %v148
  %v201 = vadd.f32 %v133, %v148
  %v202 = vadd.f32 %v134, %v148
  %v203 = vadd.f32 %v135, %v148
  %v204 = vadd.f32 %v136, %v148
  %v205 = vadd.f32 %v137, %v148
  %v206 = vadd.f32 %v138, %v148
  %v207 = vadd.f32 %v139, %v148
  %v208 = vadd.f32 %v140, %v148
  %v209 = vadd.f32 %v141, %v148
  %v210 = vadd.f32 %v142, %v148
  %v211 = vadd.f32 %v143, %v148
  %v212 = vadd.f32 %v144, %v148
  %v213 = vadd.f32 %v145, %v148
  %v214 = vmax.f32 %v150, 0.0
  %v215 = vmax.f32 %v151, 0.0
  %v216 = vmax.f32 %v152, 0.0
  %v217 = vmax.f32 %v153, 0.0
  %v218 = vmax.f32 %v154, 0.0
  %v219 = vmax.f32 %v155, 0.0
  %v220 = vmax.f32 %v156, 0.0
  %v221 = vmax.f32 %v157, 0.0
  %v222 = vmax.f32 %v158, 0.0
  %v223 = vmax.f32 %v159, 0.0
  %v224 = vmax.f32 %v160, 0.0
  %v225 = vmax.f32 %v161, 0.0
  %v226 = vmax.f32 %v162, 0.0
  %v227 = vmax.f32 %v163, 0.0
  %v228 = vmax.f32 %v164, 0.0
  %v229 = vmax.f32 %v165, 0.0
  %v230 = vmax.f32 %v166, 0.0
  %v231 = vmax.f32 %v167, 0.0
  %v232 = vmax.f32 %v168, 0.0
  %v233 = vmax.f32 %v169, 0.0
  %v234 = vmax.f32 %v170, 0.0
  %v235 = vmax.f32 %v171, 0.0
  %v236 = vmax.f32 %v172, 0.0
  %v237 = vmax.f32 %v173, 0.0
  %v238 = vmax.f32 %v174, 0.0
  %v239 = vmax.f32 %v175, 0.0
  %v240 = vmax.f32 %v176, 0.0
  %v241 = vmax.f32 %v177, 0.0
  %v242 = vmax.f32 %v178, 0.0
  %v243 = vmax.f32 %v179, 0.0
  %v244 = vmax.f32 %v180, 0.0
  %v245 = vmax.f32 %v181, 0.0
  %v246 = vmax.f32 %v182, 0.0
  %v247 = vmax.f32 %v183, 0.0
  %v248 = vmax.f32 %v184, 0.0
  %v249 = vmax.f32 %v185, 0.0
  %v250 = vmax.f32 %v186, 0.0
  %v251 = vmax.f32 %v187, 0.0
  %v252 = vmax.f32 %v188, 0.0
  %v253 = vmax.f32 %v189, 0.0
  %v254 = vmax.f32 %v190, 0.0
  %v255 = vmax.f32 %v191, 0.0
  %v256 = vmax.f32 %v192, 0.0
  %v257 = vmax.f32 %v193, 0.0
  %v258 = vmax.f32 %v194, 0.0
  %v259 = vmax.f32 %v195, 0.0
  %v260 = vmax.f32 %v196, 0.0
  %v261 = vmax.f32 %v197, 0.0
  %v262 = vmax.f32 %v198, 0.0
  %v263 = vmax.f32 %v199, 0.0
  %v264 = vmax.f32 %v200, 0.0
  %v265 = vmax.f32 %v201, 0.0
  %v266 = vmax.f32 %v202, 0.0
  %v267 = vmax.f32 %v203, 0.0
  %v268 = vmax.f32 %v204, 0.0
  %v269 = vmax.f32 %v205, 0.0
  %v270 = vmax.f32 %v206, 0.0
  %v271 = vmax.f32 %v207, 0.0
  %v272 = vmax.f32 %v208, 0.0
  %v273 = vmax.f32 %v209, 0.0
  %v274 = vmax.f32 %v210, 0.0
  %v275 = vmax.f32 %v211, 0.0
  %v276 = vmax.f32 %v212, 0.0
  %v277 = vmax.f32 %v213, 0.0
  %278 = vst [vmem:[%s3] sm:$0xff] %v214
  %279 = vst [vmem:[%s3 + $0x8] sm:$0xff] %v215
  %280 = vst [vmem:[%s3 + $0x10] sm:$0xff] %v216
  %281 = vst [vmem:[%s3 + $0x18] sm:$0xff] %v217
  %282 = vst [vmem:[%s3 + $0x20] sm:$0xff] %v218
  %283 = vst [vmem:[%s3 + $0x28] sm:$0xff] %v219
  %284 = vst [vmem:[%s3 + $0x30] sm:$0xff] %v220
  %285 = vst [vmem:[%s3 + $0x38] sm:$0xff] %v221
  %286 = vst [vmem:[%s3 + $0x40] sm:$0xff] %v222
  %287 = vst [vmem:[%s3 + $0x48] sm:$0xff] %v223
  %288 = vst [vmem:[%s3 + $0x50] sm:$0xff] %v224
  %289 = vst [vmem:[%s3 + $0x58] sm:$0xff] %v225
  %290 = vst [vmem:[%s3 + $0x60] sm:$0xff] %v226
  %291 = vst [vmem:[%s3 + $0x68] sm:$0xff] %v227
  %292 = vst [vmem:[%s3 + $0x70] sm:$0xff] %v228
  %293 = vst [vmem:[%s3 + $0x78] sm:$0xff] %v229
  %294 = vst [vmem:[%s3 + $0x80] sm:$0xff] %v230
  %295 = vst [vmem:[%s3 + $0x88] sm:$0xff] %v231
  %296 = vst [vmem:[%s3 + $0x90] sm:$0xff] %v232
  %297 = vst [vmem:[%s3 + $0x98] sm:$0xff] %v233
  %298 = vst [vmem:[%s3 + $0xa0] sm:$0xff] %v234
  %299 = vst [vmem:[%s3 + $0xa8] sm:$0xff] %v235
  %300 = vst [vmem:[%s3 + $0xb0] sm:$0xff] %v236
  %301 = vst [vmem:[%s3 + $0xb8] sm:$0xff] %v237
  %302 = vst [vmem:[%s3 + $0xc0] sm:$0xff] %v238
  %303 = vst [vmem:[%s3 + $0xc8] sm:$0xff] %v239
  %304 = vst [vmem:[%s3 + $0xd0] sm:$0xff] %v240
  %305 = vst [vmem:[%s3 + $0xd8] sm:$0xff] %v241
  %306 = vst [vmem:[%s3 + $0xe0] sm:$0xff] %v242
  %307 = vst [vmem:[%s3 + $0xe8] sm:$0xff] %v243
  %308 = vst [vmem:[%s3 + $0xf0] sm:$0xff] %v244
  %309 = vst [vmem:[%s3 + $0xf8] sm:$0xff] %v245
  %310 = vst [vmem:[%s3 + $0x100] sm:$0xff] %v246
  %311 = vst [vmem:[%s3 + $0x108] sm:$0xff] %v247
  %312 = vst [vmem:[%s3 + $0x110] sm:$0xff] %v248
  %313 = vst [vmem:[%s3 + $0x118] sm:$0xff] %v249
  %314 = vst [vmem:[%s3 + $0x120] sm:$0xff] %v250
  %315 = vst [vmem:[%s3 + $0x128] sm:$0xff] %v251
  %316 = vst [vmem:[%s3 + $0x130] sm:$0xff] %v252
  %317 = vst [vmem:[%s3 + $0x138] sm:$0xff] %v253
  %318 = vst [vmem:[%s3 + $0x140] sm:$0xff] %v254
  %319 = vst [vmem:[%s3 + $0x148] sm:$0xff] %v255
  %320 = vst [vmem:[%s3 + $0x150] sm:$0xff] %v256
  %321 = vst [vmem:[%s3 + $0x158] sm:$0xff] %v257
  %322 = vst [vmem:[%s3 + $0x160] sm:$0xff] %v258
  %323 = vst [vmem:[%s3 + $0x168] sm:$0xff] %v259
  %324 = vst [vmem:[%s3 + $0x170] sm:$0xff] %v260
  %325 = vst [vmem:[%s3 + $0x178] sm:$0xff] %v261
  %326 = vst [vmem:[%s3 + $0x180] sm:$0xff] %v262
  %327 = vst [vmem:[%s3 + $0x188] sm:$0xff] %v263
  %328 = vst [vmem:[%s3 + $0x190] sm:$0xff] %v264
  %329 = vst [vmem:[%s3 + $0x198] sm:$0xff] %v265
  %330 = vst [vmem:[%s3 + $0x1a0] sm:$0xff] %v266
  %331 = vst [vmem:[%s3 + $0x1a8] sm:$0xff] %v267
  %332 = vst [vmem:[%s3 + $0x1b0] sm:$0xff] %v268
  %333 = vst [vmem:[%s3 + $0x1b8] sm:$0xff] %v269
  %334 = vst [vmem:[%s3 + $0x1c0] sm:$0xff] %v270
  %335 = vst [vmem:[%s3 + $0x1c8] sm:$0xff] %v271
  %336 = vst [vmem:[%s3 + $0x1d0] sm:$0xff] %v272
  %337 = vst [vmem:[%s3 + $0x1d8] sm:$0xff] %v273
  %338 = vst [vmem:[%s3 + $0x1e0] sm:$0xff] %v274
  %339 = vst [vmem:[%s3 + $0x1e8] sm:$0xff] %v275
  %340 = vst [vmem:[%s3 + $0x1f0] sm:$0xff] %v276
  %341 = vst [vmem:[%s3 + $0x1f8] sm:$0xff] %v277
  // Predicated region
  $region14: #{conv_bn_relu.3} parent=0 // pred_check
    _
  $region15: #{conv_bn_relu.3} parent=0 // pred_check_branch
    %343 = sbr.rel (0) target = $region17
  $region16: #{conv_bn_relu.3} parent=0 // pred_region
    _
  $region17: #{conv_bn_relu.3} parent=0 // pred_fallthru
    _
  // Predicated region
  $region18: #{conv_bn_relu.3} parent=0 // pred_check
    _
  $region19: #{conv_bn_relu.3} parent=0 // pred_check_branch
    %345 = sbr.rel (0) target = $region21
  $region20: #{conv_bn_relu.3} parent=0 // pred_region
    _
  $region21: #{conv_bn_relu.3} parent=0 // pred_fallthru
    _

// kernel: conv_bn_relu.2
$region0: #{conv_bn_relu.2}
  #allocation0 [shape = 'u32[]', space=smem, size = 0x4, offset = 0x4, fixed_abs, tag = 'smem constant byte address 0x4 - core index']
  #allocation1 [shape = 'u32[72,128]{1,0:T(1,128)}', space=vmem, size = 0x9000, scoped, tag = 'internal scratch']
  %s0 = inlined_call_operand.vmem [shape: f32[512,128], index: 0, kind: input, shape index: {}]
  %s1 = inlined_call_operand.vmem [shape: f32[128,128], index: 1, kind: input, shape index: {}]
  %s2 = inlined_call_operand.vmem [shape: f32[512,128], index: 2, kind: output, shape index: {0}]
  %s3 = inlined_call_operand.vmem [shape: f32[8,128], index: 3, kind: output, shape index: {1}]
  %s4 = inlined_call_operand.vmem [shape: f32[8,128], index: 4, kind: output, shape index: {2}]
  %5 = xla_tuple %s2, %s3, %s4
  %s6 = sld [smem:[#allocation0]]
  $region42: #{conv_bn_relu.2} parent=0
    _
  %s8 = ssub.s32 1, %s6
  %s9 = scalar_select 0, %s8, %s6
  // Predicated region
  $region2: #{conv_bn_relu.2} parent=0 // pred_check
    _
  $region3: #{conv_bn_relu.2} parent=0 // pred_check_branch
    %11 = sbr.rel (0) target = $region5
  $region4: #{conv_bn_relu.2} parent=0 // pred_region
    _
  $region5: #{conv_bn_relu.2} parent=0 // pred_fallthru
    _
  // Predicated region
  $region6: #{conv_bn_relu.2} parent=0 // pred_check
    _
  $region7: #{conv_bn_relu.2} parent=0 // pred_check_branch
    %13 = sbr.rel (0) target = $region9
  $region8: #{conv_bn_relu.2} parent=0 // pred_region
    _
  $region9: #{conv_bn_relu.2} parent=0 // pred_fallthru
    _
  %p14 = scmp.eq.s32.totalorder 0, 0
  // Predicated region
  $region10: #{conv_bn_relu.2} parent=0 // pred_check
    %p15 = pneg %p14
  $region11: #{conv_bn_relu.2} parent=0 // pred_check_branch
    %17 = sbr.rel (%p15) target = $region13
  $region12: #{conv_bn_relu.2} parent=0 // pred_region
    %18 = vst [vmem:[%s2] sm:$0xff] 0.0
    %19 = vst [vmem:[%s2 + $0x8] sm:$0xff] 0.0
    %20 = vst [vmem:[%s2 + $0x10] sm:$0xff] 0.0
    %21 = vst [vmem:[%s2 + $0x18] sm:$0xff] 0.0
    %22 = vst [vmem:[%s2 + $0x20] sm:$0xff] 0.0
    %23 = vst [vmem:[%s2 + $0x28] sm:$0xff] 0.0
    %24 = vst [vmem:[%s2 + $0x30] sm:$0xff] 0.0
    %25 = vst [vmem:[%s2 + $0x38] sm:$0xff] 0.0
    %26 = vst [vmem:[%s2 + $0x40] sm:$0xff] 0.0
    %27 = vst [vmem:[%s2 + $0x48] sm:$0xff] 0.0
    %28 = vst [vmem:[%s2 + $0x50] sm:$0xff] 0.0
    %29 = vst [vmem:[%s2 + $0x58] sm:$0xff] 0.0
    %30 = vst [vmem:[%s2 + $0x60] sm:$0xff] 0.0
    %31 = vst [vmem:[%s2 + $0x68] sm:$0xff] 0.0
    %32 = vst [vmem:[%s2 + $0x70] sm:$0xff] 0.0
    %33 = vst [vmem:[%s2 + $0x78] sm:$0xff] 0.0
    %34 = vst [vmem:[%s2 + $0x80] sm:$0xff] 0.0
    %35 = vst [vmem:[%s2 + $0x88] sm:$0xff] 0.0
    %36 = vst [vmem:[%s2 + $0x90] sm:$0xff] 0.0
    %37 = vst [vmem:[%s2 + $0x98] sm:$0xff] 0.0
    %38 = vst [vmem:[%s2 + $0xa0] sm:$0xff] 0.0
    %39 = vst [vmem:[%s2 + $0xa8] sm:$0xff] 0.0
    %40 = vst [vmem:[%s2 + $0xb0] sm:$0xff] 0.0
    %41 = vst [vmem:[%s2 + $0xb8] sm:$0xff] 0.0
    %42 = vst [vmem:[%s2 + $0xc0] sm:$0xff] 0.0
    %43 = vst [vmem:[%s2 + $0xc8] sm:$0xff] 0.0
    %44 = vst [vmem:[%s2 + $0xd0] sm:$0xff] 0.0
    %45 = vst [vmem:[%s2 + $0xd8] sm:$0xff] 0.0
    %46 = vst [vmem:[%s2 + $0xe0] sm:$0xff] 0.0
    %47 = vst [vmem:[%s2 + $0xe8] sm:$0xff] 0.0
    %48 = vst [vmem:[%s2 + $0xf0] sm:$0xff] 0.0
    %49 = vst [vmem:[%s2 + $0xf8] sm:$0xff] 0.0
    %50 = vst [vmem:[%s2 + $0x100] sm:$0xff] 0.0
    %51 = vst [vmem:[%s2 + $0x108] sm:$0xff] 0.0
    %52 = vst [vmem:[%s2 + $0x110] sm:$0xff] 0.0
    %53 = vst [vmem:[%s2 + $0x118] sm:$0xff] 0.0
    %54 = vst [vmem:[%s2 + $0x120] sm:$0xff] 0.0
    %55 = vst [vmem:[%s2 + $0x128] sm:$0xff] 0.0
    %56 = vst [vmem:[%s2 + $0x130] sm:$0xff] 0.0
    %57 = vst [vmem:[%s2 + $0x138] sm:$0xff] 0.0
    %58 = vst [vmem:[%s2 + $0x140] sm:$0xff] 0.0
    %59 = vst [vmem:[%s2 + $0x148] sm:$0xff] 0.0
    %60 = vst [vmem:[%s2 + $0x150] sm:$0xff] 0.0
    %61 = vst [vmem:[%s2 + $0x158] sm:$0xff] 0.0
    %62 = vst [vmem:[%s2 + $0x160] sm:$0xff] 0.0
    %63 = vst [vmem:[%s2 + $0x168] sm:$0xff] 0.0
    %64 = vst [vmem:[%s2 + $0x170] sm:$0xff] 0.0
    %65 = vst [vmem:[%s2 + $0x178] sm:$0xff] 0.0
    %66 = vst [vmem:[%s2 + $0x180] sm:$0xff] 0.0
    %67 = vst [vmem:[%s2 + $0x188] sm:$0xff] 0.0
    %68 = vst [vmem:[%s2 + $0x190] sm:$0xff] 0.0
    %69 = vst [vmem:[%s2 + $0x198] sm:$0xff] 0.0
    %70 = vst [vmem:[%s2 + $0x1a0] sm:$0xff] 0.0
    %71 = vst [vmem:[%s2 + $0x1a8] sm:$0xff] 0.0
    %72 = vst [vmem:[%s2 + $0x1b0] sm:$0xff] 0.0
    %73 = vst [vmem:[%s2 + $0x1b8] sm:$0xff] 0.0
    %74 = vst [vmem:[%s2 + $0x1c0] sm:$0xff] 0.0
    %75 = vst [vmem:[%s2 + $0x1c8] sm:$0xff] 0.0
    %76 = vst [vmem:[%s2 + $0x1d0] sm:$0xff] 0.0
    %77 = vst [vmem:[%s2 + $0x1d8] sm:$0xff] 0.0
    %78 = vst [vmem:[%s2 + $0x1e0] sm:$0xff] 0.0
    %79 = vst [vmem:[%s2 + $0x1e8] sm:$0xff] 0.0
    %80 = vst [vmem:[%s2 + $0x1f0] sm:$0xff] 0.0
    %81 = vst [vmem:[%s2 + $0x1f8] sm:$0xff] 0.0
  $region13: #{conv_bn_relu.2} parent=0 // pred_fallthru
    _
  %v82 = vld [vmem:[%s2] sm:$0xff]
  %v83 = vld [vmem:[%s2 + $0x8] sm:$0xff]
  %v84 = vld [vmem:[%s2 + $0x10] sm:$0xff]
  %v85 = vld [vmem:[%s2 + $0x18] sm:$0xff]
  %v86 = vld [vmem:[%s2 + $0x20] sm:$0xff]
  %v87 = vld [vmem:[%s2 + $0x28] sm:$0xff]
  %v88 = vld [vmem:[%s2 + $0x30] sm:$0xff]
  %v89 = vld [vmem:[%s2 + $0x38] sm:$0xff]
  %v90 = vld [vmem:[%s2 + $0x40] sm:$0xff]
  %v91 = vld [vmem:[%s2 + $0x48] sm:$0xff]
  %v92 = vld [vmem:[%s2 + $0x50] sm:$0xff]
  %v93 = vld [vmem:[%s2 + $0x58] sm:$0xff]
  %v94 = vld [vmem:[%s2 + $0x60] sm:$0xff]
  %v95 = vld [vmem:[%s2 + $0x68] sm:$0xff]
  %v96 = vld [vmem:[%s2 + $0x70] sm:$0xff]
  %v97 = vld [vmem:[%s2 + $0x78] sm:$0xff]
  %v98 = vld [vmem:[%s2 + $0x80] sm:$0xff]
  %v99 = vld [vmem:[%s2 + $0x88] sm:$0xff]
  %v100 = vld [vmem:[%s2 + $0x90] sm:$0xff]
  %v101 = vld [vmem:[%s2 + $0x98] sm:$0xff]
  %v102 = vld [vmem:[%s2 + $0xa0] sm:$0xff]
  %v103 = vld [vmem:[%s2 + $0xa8] sm:$0xff]
  %v104 = vld [vmem:[%s2 + $0xb0] sm:$0xff]
  %v105 = vld [vmem:[%s2 + $0xb8] sm:$0xff]
  %v106 = vld [vmem:[%s2 + $0xc0] sm:$0xff]
  %v107 = vld [vmem:[%s2 + $0xc8] sm:$0xff]
  %v108 = vld [vmem:[%s2 + $0xd0] sm:$0xff]
  %v109 = vld [vmem:[%s2 + $0xd8] sm:$0xff]
  %v110 = vld [vmem:[%s2 + $0xe0] sm:$0xff]
  %v111 = vld [vmem:[%s2 + $0xe8] sm:$0xff]
  %v112 = vld [vmem:[%s2 + $0xf0] sm:$0xff]
  %v113 = vld [vmem:[%s2 + $0xf8] sm:$0xff]
  %v114 = vld [vmem:[%s2 + $0x100] sm:$0xff]
  %v115 = vld [vmem:[%s2 + $0x108] sm:$0xff]
  %v116 = vld [vmem:[%s2 + $0x110] sm:$0xff]
  %v117 = vld [vmem:[%s2 + $0x118] sm:$0xff]
  %v118 = vld [vmem:[%s2 + $0x120] sm:$0xff]
  %v119 = vld [vmem:[%s2 + $0x128] sm:$0xff]
  %v120 = vld [vmem:[%s2 + $0x130] sm:$0xff]
  %v121 = vld [vmem:[%s2 + $0x138] sm:$0xff]
  %v122 = vld [vmem:[%s2 + $0x140] sm:$0xff]
  %v123 = vld [vmem:[%s2 + $0x148] sm:$0xff]
  %v124 = vld [vmem:[%s2 + $0x150] sm:$0xff]
  %v125 = vld [vmem:[%s2 + $0x158] sm:$0xff]
  %v126 = vld [vmem:[%s2 + $0x160] sm:$0xff]
  %v127 = vld [vmem:[%s2 + $0x168] sm:$0xff]
  %v128 = vld [vmem:[%s2 + $0x170] sm:$0xff]
  %v129 = vld [vmem:[%s2 + $0x178] sm:$0xff]
  %v130 = vld [vmem:[%s2 + $0x180] sm:$0xff]
  %v131 = vld [vmem:[%s2 + $0x188] sm:$0xff]
  %v132 = vld [vmem:[%s2 + $0x190] sm:$0xff]
  %v133 = vld [vmem:[%s2 + $0x198] sm:$0xff]
  %v134 = vld [vmem:[%s2 + $0x1a0] sm:$0xff]
  %v135 = vld [vmem:[%s2 + $0x1a8] sm:$0xff]
  %v136 = vld [vmem:[%s2 + $0x1b0] sm:$0xff]
  %v137 = vld [vmem:[%s2 + $0x1b8] sm:$0xff]
  %v138 = vld [vmem:[%s2 + $0x1c0] sm:$0xff]
  %v139 = vld [vmem:[%s2 + $0x1c8] sm:$0xff]
  %v140 = vld [vmem:[%s2 + $0x1d0] sm:$0xff]
  %v141 = vld [vmem:[%s2 + $0x1d8] sm:$0xff]
  %v142 = vld [vmem:[%s2 + $0x1e0] sm:$0xff]
  %v143 = vld [vmem:[%s2 + $0x1e8] sm:$0xff]
  %v144 = vld [vmem:[%s2 + $0x1f0] sm:$0xff]
  %v145 = vld [vmem:[%s2 + $0x1f8] sm:$0xff]
  %v146 = vld [vmem:[%s0] sm:$0xff]
  %v147 = vld [vmem:[%s0 + $0x8] sm:$0xff]
  %v148 = vld [vmem:[%s0 + $0x10] sm:$0xff]
  %v149 = vld [vmem:[%s0 + $0x18] sm:$0xff]
  %v150 = vld [vmem:[%s0 + $0x20] sm:$0xff]
  %v151 = vld [vmem:[%s0 + $0x28] sm:$0xff]
  %v152 = vld [vmem:[%s0 + $0x30] sm:$0xff]
  %v153 = vld [vmem:[%s0 + $0x38] sm:$0xff]
  %v154 = vld [vmem:[%s0 + $0x40] sm:$0xff]
  %v155 = vld [vmem:[%s0 + $0x48] sm:$0xff]
  %v156 = vld [vmem:[%s0 + $0x50] sm:$0xff]
  %v157 = vld [vmem:[%s0 + $0x58] sm:$0xff]
  %v158 = vld [vmem:[%s0 + $0x60] sm:$0xff]
  %v159 = vld [vmem:[%s0 + $0x68] sm:$0xff]
  %v160 = vld [vmem:[%s0 + $0x70] sm:$0xff]
  %v161 = vld [vmem:[%s0 + $0x78] sm:$0xff]
  %v162 = vld [vmem:[%s0 + $0x80] sm:$0xff]
  %v163 = vld [vmem:[%s0 + $0x88] sm:$0xff]
  %v164 = vld [vmem:[%s0 + $0x90] sm:$0xff]
  %v165 = vld [vmem:[%s0 + $0x98] sm:$0xff]
  %v166 = vld [vmem:[%s0 + $0xa0] sm:$0xff]
  %v167 = vld [vmem:[%s0 + $0xa8] sm:$0xff]
  %v168 = vld [vmem:[%s0 + $0xb0] sm:$0xff]
  %v169 = vld [vmem:[%s0 + $0xb8] sm:$0xff]
  %v170 = vld [vmem:[%s0 + $0xc0] sm:$0xff]
  %v171 = vld [vmem:[%s0 + $0xc8] sm:$0xff]
  %v172 = vld [vmem:[%s0 + $0xd0] sm:$0xff]
  %v173 = vld [vmem:[%s0 + $0xd8] sm:$0xff]
  %v174 = vld [vmem:[%s0 + $0xe0] sm:$0xff]
  %v175 = vld [vmem:[%s0 + $0xe8] sm:$0xff]
  %v176 = vld [vmem:[%s0 + $0xf0] sm:$0xff]
  %v177 = vld [vmem:[%s0 + $0xf8] sm:$0xff]
  %v178 = vld [vmem:[%s0 + $0x100] sm:$0xff]
  %v179 = vld [vmem:[%s0 + $0x108] sm:$0xff]
  %v180 = vld [vmem:[%s0 + $0x110] sm:$0xff]
  %v181 = vld [vmem:[%s0 + $0x118] sm:$0xff]
  %v182 = vld [vmem:[%s0 + $0x120] sm:$0xff]
  %v183 = vld [vmem:[%s0 + $0x128] sm:$0xff]
  %v184 = vld [vmem:[%s0 + $0x130] sm:$0xff]
  %v185 = vld [vmem:[%s0 + $0x138] sm:$0xff]
  %v186 = vld [vmem:[%s0 + $0x140] sm:$0xff]
  %v187 = vld [vmem:[%s0 + $0x148] sm:$0xff]
  %v188 = vld [vmem:[%s0 + $0x150] sm:$0xff]
  %v189 = vld [vmem:[%s0 + $0x158] sm:$0xff]
  %v190 = vld [vmem:[%s0 + $0x160] sm:$0xff]
  %v191 = vld [vmem:[%s0 + $0x168] sm:$0xff]
  %v192 = vld [vmem:[%s0 + $0x170] sm:$0xff]
  %v193 = vld [vmem:[%s0 + $0x178] sm:$0xff]
  %v194 = vld [vmem:[%s0 + $0x180] sm:$0xff]
  %v195 = vld [vmem:[%s0 + $0x188] sm:$0xff]
  %v196 = vld [vmem:[%s0 + $0x190] sm:$0xff]
  %v197 = vld [vmem:[%s0 + $0x198] sm:$0xff]
  %v198 = vld [vmem:[%s0 + $0x1a0] sm:$0xff]
  %v199 = vld [vmem:[%s0 + $0x1a8] sm:$0xff]
  %v200 = vld [vmem:[%s0 + $0x1b0] sm:$0xff]
  %v201 = vld [vmem:[%s0 + $0x1b8] sm:$0xff]
  %v202 = vld [vmem:[%s0 + $0x1c0] sm:$0xff]
  %v203 = vld [vmem:[%s0 + $0x1c8] sm:$0xff]
  %v204 = vld [vmem:[%s0 + $0x1d0] sm:$0xff]
  %v205 = vld [vmem:[%s0 + $0x1d8] sm:$0xff]
  %v206 = vld [vmem:[%s0 + $0x1e0] sm:$0xff]
  %v207 = vld [vmem:[%s0 + $0x1e8] sm:$0xff]
  %v208 = vld [vmem:[%s0 + $0x1f0] sm:$0xff]
  %v209 = vld [vmem:[%s0 + $0x1f8] sm:$0xff]
  %v210 = vld [vmem:[%s1] sm:$0xff]
  %v211 = vld [vmem:[%s1 + $0x8] sm:$0xff]
  %v212 = vld [vmem:[%s1 + $0x10] sm:$0xff]
  %v213 = vld [vmem:[%s1 + $0x18] sm:$0xff]
  %v214 = vld [vmem:[%s1 + $0x20] sm:$0xff]
  %v215 = vld [vmem:[%s1 + $0x28] sm:$0xff]
  %v216 = vld [vmem:[%s1 + $0x30] sm:$0xff]
  %v217 = vld [vmem:[%s1 + $0x38] sm:$0xff]
  %v218 = vld [vmem:[%s1 + $0x40] sm:$0xff]
  %v219 = vld [vmem:[%s1 + $0x48] sm:$0xff]
  %v220 = vld [vmem:[%s1 + $0x50] sm:$0xff]
  %v221 = vld [vmem:[%s1 + $0x58] sm:$0xff]
  %v222 = vld [vmem:[%s1 + $0x60] sm:$0xff]
  %v223 = vld [vmem:[%s1 + $0x68] sm:$0xff]
  %v224 = vld [vmem:[%s1 + $0x70] sm:$0xff]
  %v225 = vld [vmem:[%s1 + $0x78] sm:$0xff]
  %226 = vmatpush.msra.mxu0 %v225
  %227 = vmatpush.msra.mxu0 %v224
  %228 = vmatpush.msra.mxu0 %v223
  %229 = vmatpush.msra.mxu0 %v222
  %230 = vmatpush.msra.mxu0 %v221
  %231 = vmatpush.msra.mxu0 %v220
  %232 = vmatpush.msra.mxu0 %v219
  %233 = vmatpush.msra.mxu0 %v218
  %234 = vmatpush.msra.mxu0 %v217
  %235 = vmatpush.msra.mxu0 %v216
  %236 = vmatpush.msra.mxu0 %v215
  %237 = vmatpush.msra.mxu0 %v214
  %238 = vmatpush.msra.mxu0 %v213
  %239 = vmatpush.msra.mxu0 %v212
  %240 = vmatpush.msra.mxu0 %v211
  %241 = vmatpush.msra.mxu0 %v210
  %242 = vmatmul.f32.gmra.mxu0 %v146
  %v243 = vpop.f32.mrf.mxu0
  %v244 = vadd.f32 0.0, %v243
  %245 = vmatmul.f32.gmra.mxu0 %v147
  %v246 = vpop.f32.mrf.mxu0
  %v247 = vadd.f32 0.0, %v246
  %248 = vmatmul.f32.gmra.mxu0 %v148
  %v249 = vpop.f32.mrf.mxu0
  %v250 = vadd.f32 0.0, %v249
  %251 = vmatmul.f32.gmra.mxu0 %v149
  %v252 = vpop.f32.mrf.mxu0
  %v253 = vadd.f32 0.0, %v252
  %254 = vmatmul.f32.gmra.mxu0 %v150
  %v255 = vpop.f32.mrf.mxu0
  %v256 = vadd.f32 0.0, %v255
  %257 = vmatmul.f32.gmra.mxu0 %v151
  %v258 = vpop.f32.mrf.mxu0
  %v259 = vadd.f32 0.0, %v258
  %260 = vmatmul.f32.gmra.mxu0 %v152
  %v261 = vpop.f32.mrf.mxu0
  %v262 = vadd.f32 0.0, %v261
  %263 = vmatmul.f32.gmra.mxu0 %v153
  %v264 = vpop.f32.mrf.mxu0
  %v265 = vadd.f32 0.0, %v264
  %266 = vmatmul.f32.gmra.mxu0 %v154
  %v267 = vpop.f32.mrf.mxu0
  %v268 = vadd.f32 0.0, %v267
  %269 = vmatmul.f32.gmra.mxu0 %v155
  %v270 = vpop.f32.mrf.mxu0
  %v271 = vadd.f32 0.0, %v270
  %272 = vmatmul.f32.gmra.mxu0 %v156
  %v273 = vpop.f32.mrf.mxu0
  %v274 = vadd.f32 0.0, %v273
  %275 = vmatmul.f32.gmra.mxu0 %v157
  %v276 = vpop.f32.mrf.mxu0
  %v277 = vadd.f32 0.0, %v276
  %278 = vmatmul.f32.gmra.mxu0 %v158
  %v279 = vpop.f32.mrf.mxu0
  %v280 = vadd.f32 0.0, %v279
  %281 = vmatmul.f32.gmra.mxu0 %v159
  %v282 = vpop.f32.mrf.mxu0
  %v283 = vadd.f32 0.0, %v282
  %284 = vmatmul.f32.gmra.mxu0 %v160
  %v285 = vpop.f32.mrf.mxu0
  %v286 = vadd.f32 0.0, %v285
  %287 = vmatmul.f32.gmra.mxu0 %v161
  %v288 = vpop.f32.mrf.mxu0
  %v289 = vadd.f32 0.0, %v288
  %290 = vmatmul.f32.gmra.mxu0 %v162
  %v291 = vpop.f32.mrf.mxu0
  %v292 = vadd.f32 0.0, %v291
  %293 = vmatmul.f32.gmra.mxu0 %v163
  %v294 = vpop.f32.mrf.mxu0
  %v295 = vadd.f32 0.0, %v294
  %296 = vmatmul.f32.gmra.mxu0 %v164
  %v297 = vpop.f32.mrf.mxu0
  %v298 = vadd.f32 0.0, %v297
  %299 = vmatmul.f32.gmra.mxu0 %v165
  %v300 = vpop.f32.mrf.mxu0
  %v301 = vadd.f32 0.0, %v300
  %302 = vmatmul.f32.gmra.mxu0 %v166
  %v303 = vpop.f32.mrf.mxu0
  %v304 = vadd.f32 0.0, %v303
  %305 = vmatmul.f32.gmra.mxu0 %v167
  %v306 = vpop.f32.mrf.mxu0
  %v307 = vadd.f32 0.0, %v306
  %308 = vmatmul.f32.gmra.mxu0 %v168
  %v309 = vpop.f32.mrf.mxu0
  %v310 = vadd.f32 0.0, %v309
  %311 = vmatmul.f32.gmra.mxu0 %v169
  %v312 = vpop.f32.mrf.mxu0
  %v313 = vadd.f32 0.0, %v312
  %314 = vmatmul.f32.gmra.mxu0 %v170
  %v315 = vpop.f32.mrf.mxu0
  %v316 = vadd.f32 0.0, %v315
  %317 = vmatmul.f32.gmra.mxu0 %v171
  %v318 = vpop.f32.mrf.mxu0
  %v319 = vadd.f32 0.0, %v318
  %320 = vmatmul.f32.gmra.mxu0 %v172
  %v321 = vpop.f32.mrf.mxu0
  %v322 = vadd.f32 0.0, %v321
  %323 = vmatmul.f32.gmra.mxu0 %v173
  %v324 = vpop.f32.mrf.mxu0
  %v325 = vadd.f32 0.0, %v324
  %326 = vmatmul.f32.gmra.mxu0 %v174
  %v327 = vpop.f32.mrf.mxu0
  %v328 = vadd.f32 0.0, %v327
  %329 = vmatmul.f32.gmra.mxu0 %v175
  %v330 = vpop.f32.mrf.mxu0
  %v331 = vadd.f32 0.0, %v330
  %332 = vmatmul.f32.gmra.mxu0 %v176
  %v333 = vpop.f32.mrf.mxu0
  %v334 = vadd.f32 0.0, %v333
  %335 = vmatmul.f32.gmra.mxu0 %v177
  %v336 = vpop.f32.mrf.mxu0
  %v337 = vadd.f32 0.0, %v336
  %338 = vmatmul.f32.gmra.mxu0 %v178
  %v339 = vpop.f32.mrf.mxu0
  %v340 = vadd.f32 0.0, %v339
  %341 = vmatmul.f32.gmra.mxu0 %v179
  %v342 = vpop.f32.mrf.mxu0
  %v343 = vadd.f32 0.0, %v342
  %344 = vmatmul.f32.gmra.mxu0 %v180
  %v345 = vpop.f32.mrf.mxu0
  %v346 = vadd.f32 0.0, %v345
  %347 = vmatmul.f32.gmra.mxu0 %v181
  %v348 = vpop.f32.mrf.mxu0
  %v349 = vadd.f32 0.0, %v348
  %350 = vmatmul.f32.gmra.mxu0 %v182
  %v351 = vpop.f32.mrf.mxu0
  %v352 = vadd.f32 0.0, %v351
  %353 = vmatmul.f32.gmra.mxu0 %v183
  %v354 = vpop.f32.mrf.mxu0
  %v355 = vadd.f32 0.0, %v354
  %356 = vmatmul.f32.gmra.mxu0 %v184
  %v357 = vpop.f32.mrf.mxu0
  %v358 = vadd.f32 0.0, %v357
  %359 = vmatmul.f32.gmra.mxu0 %v185
  %v360 = vpop.f32.mrf.mxu0
  %v361 = vadd.f32 0.0, %v360
  %362 = vmatmul.f32.gmra.mxu0 %v186
  %v363 = vpop.f32.mrf.mxu0
  %v364 = vadd.f32 0.0, %v363
  %365 = vmatmul.f32.gmra.mxu0 %v187
  %v366 = vpop.f32.mrf.mxu0
  %v367 = vadd.f32 0.0, %v366
  %368 = vmatmul.f32.gmra.mxu0 %v188
  %v369 = vpop.f32.mrf.mxu0
  %v370 = vadd.f32 0.0, %v369
  %371 = vmatmul.f32.gmra.mxu0 %v189
  %v372 = vpop.f32.mrf.mxu0
  %v373 = vadd.f32 0.0, %v372
  %374 = vmatmul.f32.gmra.mxu0 %v190
  %v375 = vpop.f32.mrf.mxu0
  %v376 = vadd.f32 0.0, %v375
  %377 = vmatmul.f32.gmra.mxu0 %v191
  %v378 = vpop.f32.mrf.mxu0
  %v379 = vadd.f32 0.0, %v378
  %380 = vmatmul.f32.gmra.mxu0 %v192
  %v381 = vpop.f32.mrf.mxu0
  %v382 = vadd.f32 0.0, %v381
  %383 = vmatmul.f32.gmra.mxu0 %v193
  %v384 = vpop.f32.mrf.mxu0
  %v385 = vadd.f32 0.0, %v384
  %386 = vmatmul.f32.gmra.mxu0 %v194
  %v387 = vpop.f32.mrf.mxu0
  %v388 = vadd.f32 0.0, %v387
  %389 = vmatmul.f32.gmra.mxu0 %v195
  %v390 = vpop.f32.mrf.mxu0
  %v391 = vadd.f32 0.0, %v390
  %392 = vmatmul.f32.gmra.mxu0 %v196
  %v393 = vpop.f32.mrf.mxu0
  %v394 = vadd.f32 0.0, %v393
  %395 = vmatmul.f32.gmra.mxu0 %v197
  %v396 = vpop.f32.mrf.mxu0
  %v397 = vadd.f32 0.0, %v396
  %398 = vmatmul.f32.gmra.mxu0 %v198
  %v399 = vpop.f32.mrf.mxu0
  %v400 = vadd.f32 0.0, %v399
  %401 = vmatmul.f32.gmra.mxu0 %v199
  %v402 = vpop.f32.mrf.mxu0
  %v403 = vadd.f32 0.0, %v402
  %404 = vmatmul.f32.gmra.mxu0 %v200
  %v405 = vpop.f32.mrf.mxu0
  %v406 = vadd.f32 0.0, %v405
  %407 = vmatmul.f32.gmra.mxu0 %v201
  %v408 = vpop.f32.mrf.mxu0
  %v409 = vadd.f32 0.0, %v408
  %410 = vmatmul.f32.gmra.mxu0 %v202
  %v411 = vpop.f32.mrf.mxu0
  %v412 = vadd.f32 0.0, %v411
  %413 = vmatmul.f32.gmra.mxu0 %v203
  %v414 = vpop.f32.mrf.mxu0
  %v415 = vadd.f32 0.0, %v414
  %416 = vmatmul.f32.gmra.mxu0 %v204
  %v417 = vpop.f32.mrf.mxu0
  %v418 = vadd.f32 0.0, %v417
  %419 = vmatmul.f32.gmra.mxu0 %v205
  %v420 = vpop.f32.mrf.mxu0
  %v421 = vadd.f32 0.0, %v420
  %422 = vmatmul.f32.gmra.mxu0 %v206
  %v423 = vpop.f32.mrf.mxu0
  %v424 = vadd.f32 0.0, %v423
  %425 = vmatmul.f32.gmra.mxu0 %v207
  %v426 = vpop.f32.mrf.mxu0
  %v427 = vadd.f32 0.0, %v426
  %428 = vmatmul.f32.gmra.mxu0 %v208
  %v429 = vpop.f32.mrf.mxu0
  %v430 = vadd.f32 0.0, %v429
  %431 = vmatmul.f32.gmra.mxu0 %v209
  %v432 = vpop.f32.mrf.mxu0
  %v433 = vadd.f32 0.0, %v432
  %434 = vdwg.mxu0
  %v435 = vadd.f32 %v82, %v244
  %v436 = vadd.f32 %v83, %v247
  %v437 = vadd.f32 %v84, %v250
  %v438 = vadd.f32 %v85, %v253
  %v439 = vadd.f32 %v86, %v256
  %v440 = vadd.f32 %v87, %v259
  %v441 = vadd.f32 %v88, %v262
  %v442 = vadd.f32 %v89, %v265
  %v443 = vadd.f32 %v90, %v268
  %v444 = vadd.f32 %v91, %v271
  %v445 = vadd.f32 %v92, %v274
  %v446 = vadd.f32 %v93, %v277
  %v447 = vadd.f32 %v94, %v280
  %v448 = vadd.f32 %v95, %v283
  %v449 = vadd.f32 %v96, %v286
  %v450 = vadd.f32 %v97, %v289
  %v451 = vadd.f32 %v98, %v292
  %v452 = vadd.f32 %v99, %v295
  %v453 = vadd.f32 %v100, %v298
  %v454 = vadd.f32 %v101, %v301
  %v455 = vadd.f32 %v102, %v304
  %v456 = vadd.f32 %v103, %v307
  %v457 = vadd.f32 %v104, %v310
  %v458 = vadd.f32 %v105, %v313
  %v459 = vadd.f32 %v106, %v316
  %v460 = vadd.f32 %v107, %v319
  %v461 = vadd.f32 %v108, %v322
  %v462 = vadd.f32 %v109, %v325
  %v463 = vadd.f32 %v110, %v328
  %v464 = vadd.f32 %v111, %v331
  %v465 = vadd.f32 %v112, %v334
  %v466 = vadd.f32 %v113, %v337
  %v467 = vadd.f32 %v114, %v340
  %v468 = vadd.f32 %v115, %v343
  %v469 = vadd.f32 %v116, %v346
  %v470 = vadd.f32 %v117, %v349
  %v471 = vadd.f32 %v118, %v352
  %v472 = vadd.f32 %v119, %v355
  %v473 = vadd.f32 %v120, %v358
  %v474 = vadd.f32 %v121, %v361
  %v475 = vadd.f32 %v122, %v364
  %v476 = vadd.f32 %v123, %v367
  %v477 = vadd.f32 %v124, %v370
  %v478 = vadd.f32 %v125, %v373
  %v479 = vadd.f32 %v126, %v376
  %v480 = vadd.f32 %v127, %v379
  %v481 = vadd.f32 %v128, %v382
  %v482 = vadd.f32 %v129, %v385
  %v483 = vadd.f32 %v130, %v388
  %v484 = vadd.f32 %v131, %v391
  %v485 = vadd.f32 %v132, %v394
  %v486 = vadd.f32 %v133, %v397
  %v487 = vadd.f32 %v134, %v400
  %v488 = vadd.f32 %v135, %v403
  %v489 = vadd.f32 %v136, %v406
  %v490 = vadd.f32 %v137, %v409
  %v491 = vadd.f32 %v138, %v412
  %v492 = vadd.f32 %v139, %v415
  %v493 = vadd.f32 %v140, %v418
  %v494 = vadd.f32 %v141, %v421
  %v495 = vadd.f32 %v142, %v424
  %v496 = vadd.f32 %v143, %v427
  %v497 = vadd.f32 %v144, %v430
  %v498 = vadd.f32 %v145, %v433
  %499 = vst [vmem:[%s2] sm:$0xff] %v435
  %500 = vst [vmem:[%s2 + $0x8] sm:$0xff] %v436
  %501 = vst [vmem:[%s2 + $0x10] sm:$0xff] %v437
  %502 = vst [vmem:[%s2 + $0x18] sm:$0xff] %v438
  %503 = vst [vmem:[%s2 + $0x20] sm:$0xff] %v439
  %504 = vst [vmem:[%s2 + $0x28] sm:$0xff] %v440
  %505 = vst [vmem:[%s2 + $0x30] sm:$0xff] %v441
  %506 = vst [vmem:[%s2 + $0x38] sm:$0xff] %v442
  %507 = vst [vmem:[%s2 + $0x40] sm:$0xff] %v443
  %508 = vst [vmem:[%s2 + $0x48] sm:$0xff] %v444
  %509 = vst [vmem:[%s2 + $0x50] sm:$0xff] %v445
  %510 = vst [vmem:[%s2 + $0x58] sm:$0xff] %v446
  %511 = vst [vmem:[%s2 + $0x60] sm:$0xff] %v447
  %512 = vst [vmem:[%s2 + $0x68] sm:$0xff] %v448
  %513 = vst [vmem:[%s2 + $0x70] sm:$0xff] %v449
  %514 = vst [vmem:[%s2 + $0x78] sm:$0xff] %v450
  %515 = vst [vmem:[%s2 + $0x80] sm:$0xff] %v451
  %516 = vst [vmem:[%s2 + $0x88] sm:$0xff] %v452
  %517 = vst [vmem:[%s2 + $0x90] sm:$0xff] %v453
  %518 = vst [vmem:[%s2 + $0x98] sm:$0xff] %v454
  %519 = vst [vmem:[%s2 + $0xa0] sm:$0xff] %v455
  %520 = vst [vmem:[%s2 + $0xa8] sm:$0xff] %v456
  %521 = vst [vmem:[%s2 + $0xb0] sm:$0xff] %v457
  %522 = vst [vmem:[%s2 + $0xb8] sm:$0xff] %v458
  %523 = vst [vmem:[%s2 + $0xc0] sm:$0xff] %v459
  %524 = vst [vmem:[%s2 + $0xc8] sm:$0xff] %v460
  %525 = vst [vmem:[%s2 + $0xd0] sm:$0xff] %v461
  %526 = vst [vmem:[%s2 + $0xd8] sm:$0xff] %v462
  %527 = vst [vmem:[%s2 + $0xe0] sm:$0xff] %v463
  %528 = vst [vmem:[%s2 + $0xe8] sm:$0xff] %v464
  %529 = vst [vmem:[%s2 + $0xf0] sm:$0xff] %v465
  %530 = vst [vmem:[%s2 + $0xf8] sm:$0xff] %v466
  %531 = vst [vmem:[%s2 + $0x100] sm:$0xff] %v467
  %532 = vst [vmem:[%s2 + $0x108] sm:$0xff] %v468
  %533 = vst [vmem:[%s2 + $0x110] sm:$0xff] %v469
  %534 = vst [vmem:[%s2 + $0x118] sm:$0xff] %v470
  %535 = vst [vmem:[%s2 + $0x120] sm:$0xff] %v471
  %536 = vst [vmem:[%s2 + $0x128] sm:$0xff] %v472
  %537 = vst [vmem:[%s2 + $0x130] sm:$0xff] %v473
  %538 = vst [vmem:[%s2 + $0x138] sm:$0xff] %v474
  %539 = vst [vmem:[%s2 + $0x140] sm:$0xff] %v475
  %540 = vst [vmem:[%s2 + $0x148] sm:$0xff] %v476
  %541 = vst [vmem:[%s2 + $0x150] sm:$0xff] %v477
  %542 = vst [vmem:[%s2 + $0x158] sm:$0xff] %v478
  %543 = vst [vmem:[%s2 + $0x160] sm:$0xff] %v479
  %544 = vst [vmem:[%s2 + $0x168] sm:$0xff] %v480
  %545 = vst [vmem:[%s2 + $0x170] sm:$0xff] %v481
  %546 = vst [vmem:[%s2 + $0x178] sm:$0xff] %v482
  %547 = vst [vmem:[%s2 + $0x180] sm:$0xff] %v483
  %548 = vst [vmem:[%s2 + $0x188] sm:$0xff] %v484
  %549 = vst [vmem:[%s2 + $0x190] sm:$0xff] %v485
  %550 = vst [vmem:[%s2 + $0x198] sm:$0xff] %v486
  %551 = vst [vmem:[%s2 + $0x1a0] sm:$0xff] %v487
  %552 = vst [vmem:[%s2 + $0x1a8] sm:$0xff] %v488
  %553 = vst [vmem:[%s2 + $0x1b0] sm:$0xff] %v489
  %554 = vst [vmem:[%s2 + $0x1b8] sm:$0xff] %v490
  %555 = vst [vmem:[%s2 + $0x1c0] sm:$0xff] %v491
  %556 = vst [vmem:[%s2 + $0x1c8] sm:$0xff] %v492
  %557 = vst [vmem:[%s2 + $0x1d0] sm:$0xff] %v493
  %558 = vst [vmem:[%s2 + $0x1d8] sm:$0xff] %v494
  %559 = vst [vmem:[%s2 + $0x1e0] sm:$0xff] %v495
  %560 = vst [vmem:[%s2 + $0x1e8] sm:$0xff] %v496
  %561 = vst [vmem:[%s2 + $0x1f0] sm:$0xff] %v497
  %562 = vst [vmem:[%s2 + $0x1f8] sm:$0xff] %v498
  // Predicated region
  $region14: #{conv_bn_relu.2} parent=0 // pred_check
    %p563 = pneg %p14
  $region15: #{conv_bn_relu.2} parent=0 // pred_check_branch
    %565 = sbr.rel (%p563) target = $region17
  $region16: #{conv_bn_relu.2} parent=0 // pred_region
    %v566 = vld [vmem:[%s2] sm:$0xff]
    %v567 = vld [vmem:[%s2 + $0x8] sm:$0xff]
    %v568 = vld [vmem:[%s2 + $0x10] sm:$0xff]
    %v569 = vld [vmem:[%s2 + $0x18] sm:$0xff]
    %v570 = vld [vmem:[%s2 + $0x20] sm:$0xff]
    %v571 = vld [vmem:[%s2 + $0x28] sm:$0xff]
    %v572 = vld [vmem:[%s2 + $0x30] sm:$0xff]
    %v573 = vld [vmem:[%s2 + $0x38] sm:$0xff]
    %v574 = vld [vmem:[%s2 + $0x40] sm:$0xff]
    %v575 = vld [vmem:[%s2 + $0x48] sm:$0xff]
    %v576 = vld [vmem:[%s2 + $0x50] sm:$0xff]
    %v577 = vld [vmem:[%s2 + $0x58] sm:$0xff]
    %v578 = vld [vmem:[%s2 + $0x60] sm:$0xff]
    %v579 = vld [vmem:[%s2 + $0x68] sm:$0xff]
    %v580 = vld [vmem:[%s2 + $0x70] sm:$0xff]
    %v581 = vld [vmem:[%s2 + $0x78] sm:$0xff]
    %v582 = vld [vmem:[%s2 + $0x80] sm:$0xff]
    %v583 = vld [vmem:[%s2 + $0x88] sm:$0xff]
    %v584 = vld [vmem:[%s2 + $0x90] sm:$0xff]
    %v585 = vld [vmem:[%s2 + $0x98] sm:$0xff]
    %v586 = vld [vmem:[%s2 + $0xa0] sm:$0xff]
    %v587 = vld [vmem:[%s2 + $0xa8] sm:$0xff]
    %v588 = vld [vmem:[%s2 + $0xb0] sm:$0xff]
    %v589 = vld [vmem:[%s2 + $0xb8] sm:$0xff]
    %v590 = vld [vmem:[%s2 + $0xc0] sm:$0xff]
    %v591 = vld [vmem:[%s2 + $0xc8] sm:$0xff]
    %v592 = vld [vmem:[%s2 + $0xd0] sm:$0xff]
    %v593 = vld [vmem:[%s2 + $0xd8] sm:$0xff]
    %v594 = vld [vmem:[%s2 + $0xe0] sm:$0xff]
    %v595 = vld [vmem:[%s2 + $0xe8] sm:$0xff]
    %v596 = vld [vmem:[%s2 + $0xf0] sm:$0xff]
    %v597 = vld [vmem:[%s2 + $0xf8] sm:$0xff]
    %v598 = vld [vmem:[%s2 + $0x100] sm:$0xff]
    %v599 = vld [vmem:[%s2 + $0x108] sm:$0xff]
    %v600 = vld [vmem:[%s2 + $0x110] sm:$0xff]
    %v601 = vld [vmem:[%s2 + $0x118] sm:$0xff]
    %v602 = vld [vmem:[%s2 + $0x120] sm:$0xff]
    %v603 = vld [vmem:[%s2 + $0x128] sm:$0xff]
    %v604 = vld [vmem:[%s2 + $0x130] sm:$0xff]
    %v605 = vld [vmem:[%s2 + $0x138] sm:$0xff]
    %v606 = vld [vmem:[%s2 + $0x140] sm:$0xff]
    %v607 = vld [vmem:[%s2 + $0x148] sm:$0xff]
    %v608 = vld [vmem:[%s2 + $0x150] sm:$0xff]
    %v609 = vld [vmem:[%s2 + $0x158] sm:$0xff]
    %v610 = vld [vmem:[%s2 + $0x160] sm:$0xff]
    %v611 = vld [vmem:[%s2 + $0x168] sm:$0xff]
    %v612 = vld [vmem:[%s2 + $0x170] sm:$0xff]
    %v613 = vld [vmem:[%s2 + $0x178] sm:$0xff]
    %v614 = vld [vmem:[%s2 + $0x180] sm:$0xff]
    %v615 = vld [vmem:[%s2 + $0x188] sm:$0xff]
    %v616 = vld [vmem:[%s2 + $0x190] sm:$0xff]
    %v617 = vld [vmem:[%s2 + $0x198] sm:$0xff]
    %v618 = vld [vmem:[%s2 + $0x1a0] sm:$0xff]
    %v619 = vld [vmem:[%s2 + $0x1a8] sm:$0xff]
    %v620 = vld [vmem:[%s2 + $0x1b0] sm:$0xff]
    %v621 = vld [vmem:[%s2 + $0x1b8] sm:$0xff]
    %v622 = vld [vmem:[%s2 + $0x1c0] sm:$0xff]
    %v623 = vld [vmem:[%s2 + $0x1c8] sm:$0xff]
    %v624 = vld [vmem:[%s2 + $0x1d0] sm:$0xff]
    %v625 = vld [vmem:[%s2 + $0x1d8] sm:$0xff]
    %v626 = vld [vmem:[%s2 + $0x1e0] sm:$0xff]
    %v627 = vld [vmem:[%s2 + $0x1e8] sm:$0xff]
    %v628 = vld [vmem:[%s2 + $0x1f0] sm:$0xff]
    %v629 = vld [vmem:[%s2 + $0x1f8] sm:$0xff]
    %v630 = vadd.f32 %v566, %v567
    %v631 = vadd.f32 %v630, %v568
    %v632 = vadd.f32 %v631, %v569
    %v633 = vadd.f32 %v632, %v570
    %v634 = vadd.f32 %v633, %v571
    %v635 = vadd.f32 %v634, %v572
    %v636 = vadd.f32 %v635, %v573
    %v637 = vadd.f32 %v636, %v574
    %v638 = vadd.f32 %v637, %v575
    %v639 = vadd.f32 %v638, %v576
    %v640 = vadd.f32 %v639, %v577
    %v641 = vadd.f32 %v640, %v578
    %v642 = vadd.f32 %v641, %v579
    %v643 = vadd.f32 %v642, %v580
    %v644 = vadd.f32 %v643, %v581
    %v645 = vadd.f32 %v644, %v582
    %v646 = vadd.f32 %v645, %v583
    %v647 = vadd.f32 %v646, %v584
    %v648 = vadd.f32 %v647, %v585
    %v649 = vadd.f32 %v648, %v586
    %v650 = vadd.f32 %v649, %v587
    %v651 = vadd.f32 %v650, %v588
    %v652 = vadd.f32 %v651, %v589
    %v653 = vadd.f32 %v652, %v590
    %v654 = vadd.f32 %v653, %v591
    %v655 = vadd.f32 %v654, %v592
    %v656 = vadd.f32 %v655, %v593
    %v657 = vadd.f32 %v656, %v594
    %v658 = vadd.f32 %v657, %v595
    %v659 = vadd.f32 %v658, %v596
    %v660 = vadd.f32 %v659, %v597
    %v661 = vadd.f32 %v660, %v598
    %v662 = vadd.f32 %v661, %v599
    %v663 = vadd.f32 %v662, %v600
    %v664 = vadd.f32 %v663, %v601
    %v665 = vadd.f32 %v664, %v602
    %v666 = vadd.f32 %v665, %v603
    %v667 = vadd.f32 %v666, %v604
    %v668 = vadd.f32 %v667, %v605
    %v669 = vadd.f32 %v668, %v606
    %v670 = vadd.f32 %v669, %v607
    %v671 = vadd.f32 %v670, %v608
    %v672 = vadd.f32 %v671, %v609
    %v673 = vadd.f32 %v672, %v610
    %v674 = vadd.f32 %v673, %v611
    %v675 = vadd.f32 %v674, %v612
    %v676 = vadd.f32 %v675, %v613
    %v677 = vadd.f32 %v676, %v614
    %v678 = vadd.f32 %v677, %v615
    %v679 = vadd.f32 %v678, %v616
    %v680 = vadd.f32 %v679, %v617
    %v681 = vadd.f32 %v680, %v618
    %v682 = vadd.f32 %v681, %v619
    %v683 = vadd.f32 %v682, %v620
    %v684 = vadd.f32 %v683, %v621
    %v685 = vadd.f32 %v684, %v622
    %v686 = vadd.f32 %v685, %v623
    %v687 = vadd.f32 %v686, %v624
    %v688 = vadd.f32 %v687, %v625
    %v689 = vadd.f32 %v688, %v626
    %v690 = vadd.f32 %v689, %v627
    %v691 = vadd.f32 %v690, %v628
    %v692 = vadd.f32 %v691, %v629
    %v693 = vrot.slane %v692, 4
    %v694 = vadd.f32 %v692, %v693
    %v695 = vrot.slane %v694, 2
    %v696 = vadd.f32 %v694, %v695
    %v697 = vrot.slane %v696, 1
    %v698 = vadd.f32 %v696, %v697
    %v699 = vmul.f32 %v566, %v566
    %v700 = vmul.f32 %v567, %v567
    %v701 = vmul.f32 %v568, %v568
    %v702 = vmul.f32 %v569, %v569
    %v703 = vmul.f32 %v570, %v570
    %v704 = vmul.f32 %v571, %v571
    %v705 = vmul.f32 %v572, %v572
    %v706 = vmul.f32 %v573, %v573
    %v707 = vmul.f32 %v574, %v574
    %v708 = vmul.f32 %v575, %v575
    %v709 = vmul.f32 %v576, %v576
    %v710 = vmul.f32 %v577, %v577
    %v711 = vmul.f32 %v578, %v578
    %v712 = vmul.f32 %v579, %v579
    %v713 = vmul.f32 %v580, %v580
    %v714 = vmul.f32 %v581, %v581
    %v715 = vmul.f32 %v582, %v582
    %v716 = vmul.f32 %v583, %v583
    %v717 = vmul.f32 %v584, %v584
    %v718 = vmul.f32 %v585, %v585
    %v719 = vmul.f32 %v586, %v586
    %v720 = vmul.f32 %v587, %v587
    %v721 = vmul.f32 %v588, %v588
    %v722 = vmul.f32 %v589, %v589
    %v723 = vmul.f32 %v590, %v590
    %v724 = vmul.f32 %v591, %v591
    %v725 = vmul.f32 %v592, %v592
    %v726 = vmul.f32 %v593, %v593
    %v727 = vmul.f32 %v594, %v594
    %v728 = vmul.f32 %v595, %v595
    %v729 = vmul.f32 %v596, %v596
    %v730 = vmul.f32 %v597, %v597
    %v731 = vmul.f32 %v598, %v598
    %v732 = vmul.f32 %v599, %v599
    %v733 = vmul.f32 %v600, %v600
    %v734 = vmul.f32 %v601, %v601
    %v735 = vmul.f32 %v602, %v602
    %v736 = vmul.f32 %v603, %v603
    %v737 = vmul.f32 %v604, %v604
    %v738 = vmul.f32 %v605, %v605
    %v739 = vmul.f32 %v606, %v606
    %v740 = vmul.f32 %v607, %v607
    %v741 = vmul.f32 %v608, %v608
    %v742 = vmul.f32 %v609, %v609
    %v743 = vmul.f32 %v610, %v610
    %v744 = vmul.f32 %v611, %v611
    %v745 = vmul.f32 %v612, %v612
    %v746 = vmul.f32 %v613, %v613
    %v747 = vmul.f32 %v614, %v614
    %v748 = vmul.f32 %v615, %v615
    %v749 = vmul.f32 %v616, %v616
    %v750 = vmul.f32 %v617, %v617
    %v751 = vmul.f32 %v618, %v618
    %v752 = vmul.f32 %v619, %v619
    %v753 = vmul.f32 %v620, %v620
    %v754 = vmul.f32 %v621, %v621
    %v755 = vmul.f32 %v622, %v622
    %v756 = vmul.f32 %v623, %v623
    %v757 = vmul.f32 %v624, %v624
    %v758 = vmul.f32 %v625, %v625
    %v759 = vmul.f32 %v626, %v626
    %v760 = vmul.f32 %v627, %v627
    %v761 = vmul.f32 %v628, %v628
    %v762 = vmul.f32 %v629, %v629
    %v763 = vadd.f32 %v699, %v700
    %v764 = vadd.f32 %v763, %v701
    %v765 = vadd.f32 %v764, %v702
    %v766 = vadd.f32 %v765, %v703
    %v767 = vadd.f32 %v766, %v704
    %v768 = vadd.f32 %v767, %v705
    %v769 = vadd.f32 %v768, %v706
    %v770 = vadd.f32 %v769, %v707
    %v771 = vadd.f32 %v770, %v708
    %v772 = vadd.f32 %v771, %v709
    %v773 = vadd.f32 %v772, %v710
    %v774 = vadd.f32 %v773, %v711
    %v775 = vadd.f32 %v774, %v712
    %v776 = vadd.f32 %v775, %v713
    %v777 = vadd.f32 %v776, %v714
    %v778 = vadd.f32 %v777, %v715
    %v779 = vadd.f32 %v778, %v716
    %v780 = vadd.f32 %v779, %v717
    %v781 = vadd.f32 %v780, %v718
    %v782 = vadd.f32 %v781, %v719
    %v783 = vadd.f32 %v782, %v720
    %v784 = vadd.f32 %v783, %v721
    %v785 = vadd.f32 %v784, %v722
    %v786 = vadd.f32 %v785, %v723
    %v787 = vadd.f32 %v786, %v724
    %v788 = vadd.f32 %v787, %v725
    %v789 = vadd.f32 %v788, %v726
    %v790 = vadd.f32 %v789, %v727
    %v791 = vadd.f32 %v790, %v728
    %v792 = vadd.f32 %v791, %v729
    %v793 = vadd.f32 %v792, %v730
    %v794 = vadd.f32 %v793, %v731
    %v795 = vadd.f32 %v794, %v732
    %v796 = vadd.f32 %v795, %v733
    %v797 = vadd.f32 %v796, %v734
    %v798 = vadd.f32 %v797, %v735
    %v799 = vadd.f32 %v798, %v736
    %v800 = vadd.f32 %v799, %v737
    %v801 = vadd.f32 %v800, %v738
    %v802 = vadd.f32 %v801, %v739
    %v803 = vadd.f32 %v802, %v740
    %v804 = vadd.f32 %v803, %v741
    %v805 = vadd.f32 %v804, %v742
    %v806 = vadd.f32 %v805, %v743
    %v807 = vadd.f32 %v806, %v744
    %v808 = vadd.f32 %v807, %v745
    %v809 = vadd.f32 %v808, %v746
    %v810 = vadd.f32 %v809, %v747
    %v811 = vadd.f32 %v810, %v748
    %v812 = vadd.f32 %v811, %v749
    %v813 = vadd.f32 %v812, %v750
    %v814 = vadd.f32 %v813, %v751
    %v815 = vadd.f32 %v814, %v752
    %v816 = vadd.f32 %v815, %v753
    %v817 = vadd.f32 %v816, %v754
    %v818 = vadd.f32 %v817, %v755
    %v819 = vadd.f32 %v818, %v756
    %v820 = vadd.f32 %v819, %v757
    %v821 = vadd.f32 %v820, %v758
    %v822 = vadd.f32 %v821, %v759
    %v823 = vadd.f32 %v822, %v760
    %v824 = vadd.f32 %v823, %v761
    %v825 = vadd.f32 %v824, %v762
    %v826 = vrot.slane %v825, 4
    %v827 = vadd.f32 %v825, %v826
    %v828 = vrot.slane %v827, 2
    %v829 = vadd.f32 %v827, %v828
    %v830 = vrot.slane %v829, 1
    %v831 = vadd.f32 %v829, %v830
    %832 = vst [vmem:[%s3] sm:$0xff] %v698
    %833 = vst [vmem:[%s4] sm:$0xff] %v831
  $region17: #{conv_bn_relu.2} parent=0 // pred_fallthru
    _
  // Predicated region
  $region18: #{conv_bn_relu.2} parent=0 // pred_check
    _
  $region19: #{conv_bn_relu.2} parent=0 // pred_check_branch
    %835 = sbr.rel (0) target = $region21
  $region20: #{conv_bn_relu.2} parent=0 // pred_region
    _
  $region21: #{conv_bn_relu.2} parent=0 // pred_fallthru
    _
  // Predicated region
  $region22: #{conv_bn_relu.2} parent=0 // pred_check
    _
  $region23: #{conv_bn_relu.2} parent=0 // pred_check_branch
    %837 = sbr.rel (0) target = $region25
  $region24: #{conv_bn_relu.2} parent=0 // pred_region
    _
  $region25: #{conv_bn_relu.2} parent=0 // pred_fallthru
    _
  // Predicated region
  $region26: #{conv_bn_relu.2} parent=0 // pred_check
    _
  $region27: #{conv_bn_relu.2} parent=0 // pred_check_branch
    %839 = sbr.rel (0) target = $region29
  $region28: #{conv_bn_relu.2} parent=0 // pred_region
    _
  $region29: #{conv_bn_relu.2} parent=0 // pred_fallthru
    _
  // Predicated region
  $region30: #{conv_bn_relu.2} parent=0 // pred_check
    _
  $region31: #{conv_bn_relu.2} parent=0 // pred_check_branch
    %841 = sbr.rel (0) target = $region33
  $region32: #{conv_bn_relu.2} parent=0 // pred_region
    _
  $region33: #{conv_bn_relu.2} parent=0 // pred_fallthru
    _
  // Predicated region
  $region34: #{conv_bn_relu.2} parent=0 // pred_check
    _
  $region35: #{conv_bn_relu.2} parent=0 // pred_check_branch
    %843 = sbr.rel (0) target = $region37
  $region36: #{conv_bn_relu.2} parent=0 // pred_region
    _
  $region37: #{conv_bn_relu.2} parent=0 // pred_fallthru
    _
  // Predicated region
  $region38: #{conv_bn_relu.2} parent=0 // pred_check
    _
  $region39: #{conv_bn_relu.2} parent=0 // pred_check_branch
    %845 = sbr.rel (0) target = $region41
  $region40: #{conv_bn_relu.2} parent=0 // pred_region
    _
  $region41: #{conv_bn_relu.2} parent=0 // pred_fallthru
    _

</llo_original>
